<compile_context>
chip_gen: v7x
topology: tpu7x:2x2x1
jax: 0.10.0
libtpu: 0.0.40
codegen_flags: <defaults>
</compile_context>

<pallas_src>
import functools
import math

import jax
import jax.numpy as jnp
from jax import lax
from jax.experimental import pallas as pl
from jax.experimental.pallas import tpu as pltpu

# Row indices into the packed (13, H) vector-parameter table.
_B1, _G1, _BE1, _B2, _B3, _B4, _GN, _BNR, _BEH, _GE, _BGE, _WE2, _BO = range(13)
# Slice indices into the packed (5, H, H) square-weight stack.
_W1, _W2, _W3, _W4, _WE1 = range(5)


def _grid_params():
    """(target MXU rows per grid step, minimum grid steps) for this TPU gen."""
    try:
        kind = jax.devices()[0].device_kind.lower()
    except Exception:
        return 128, 2
    target_rows = 256 if any(t in kind for t in ("v6", "v7", "7x")) else 128
    # Chips with 2 TensorCores sharing the "parallel" grid axis: keep >= 2 steps.
    two_cores = any(t in kind for t in ("v7", "7x", "v4", "v5p"))
    return target_rows, (2 if two_cores else 1)


def _choose_bblk(batch, n_nodes, target_rows, min_grid):
    # bn = bblk * n_nodes must be a multiple of 128 so every output / gram slab
    # is lane-dense (unmasked 128-lane stores).
    base = math.lcm(n_nodes, 128) // n_nodes
    bblk = max(base, (target_rows // (base * n_nodes)) * base)
    # Keep >= min_grid steps (when the batch allows it) so both TensorCores work.
    while bblk > base and -(-batch // bblk) < min_grid:
        bblk -= base
    return bblk


def _layernorm(x, gamma, beta, eps=1e-5):
    # One-pass variance: sum and sum-of-squares are independent reductions.
    mu = jnp.mean(x, axis=-1, keepdims=True)
    ms = jnp.mean(x * x, axis=-1, keepdims=True)
    var = jnp.maximum(ms - mu * mu, 0.0)
    return (x - mu) * lax.rsqrt(var + eps) * gamma + beta


def _ring_policy_kernel(h_ref, adjc_ref, mask_ref, sel_ref, bsel_ref,
                        wsq_ref, vec_ref, out_ref,
                        *, n_nodes, inv_sqrt_h, inv_n):
    f32, bf16 = jnp.float32, jnp.bfloat16

    h = h_ref[...]                 # (bn, D)   bf16, bblk graphs stacked row-wise
    mask = mask_ref[...]           # (bn, bn)  f32 block-diagonal 0/1 mask (hoisted)
    sel = sel_ref[...]             # (Nr, bn)  f32, sel[i, c] = (c % N == i)
    bsel = bsel_ref[...]           # (bblk,bn) f32, bsel[b, c] = (c // N == b)
    vtab = vec_ref[...]            # (13, H)   f32 packed biases / LN params

    def vrow(i):                   # (1, H) row of the packed table
        return vtab[i:i + 1, :]

    # --- expand compact adjacency to block-diagonal (0/1 entries -> exact) ---
    a_full = jnp.dot(adjc_ref[...], sel[:n_nodes, :],
                     preferred_element_type=f32)            # (bn, bn)
    a_bd = (a_full * mask).astype(bf16)

    # GINConv (eps = 0): x_i + sum_{j in N(i)} x_j  -> one bf16 MXU matmul.
    agg = h.astype(f32) + jnp.dot(a_bd, h, preferred_element_type=f32)

    # GIN nn = MLP(add_layer_norm=True): Linear -> LN -> ReLU -> Linear
    z = jnp.dot(agg.astype(bf16), wsq_ref[_W1], preferred_element_type=f32) + vrow(_B1)
    z = jnp.maximum(_layernorm(z, vrow(_G1), vrow(_BE1)), 0.0)
    z = jnp.dot(z.astype(bf16), wsq_ref[_W2], preferred_element_type=f32) + vrow(_B2)

    # conv_blks[1]: Linear -> ReLU -> Linear
    z = jnp.maximum(
        jnp.dot(z.astype(bf16), wsq_ref[_W3], preferred_element_type=f32) + vrow(_B3),
        0.0)
    z = jnp.dot(z.astype(bf16), wsq_ref[_W4], preferred_element_type=f32) + vrow(_B4)

    # x = self.norm(x_new)   (single conv layer -> no residual add)
    x = _layernorm(z, vrow(_GN), vrow(_BNR))                 # (bn, H) f32
    xb = x.astype(bf16)

    # _group_mean: one matmul with the hoisted 0/1 block selector.
    mean = jnp.dot(bsel.astype(bf16), xb, preferred_element_type=f32) * inv_n

    # exit MLP: Linear -> LayerNorm -> ReLU -> Linear(H, 1)
    e = jnp.dot(mean.astype(bf16), wsq_ref[_WE1], preferred_element_type=f32) + vrow(_BEH)
    e = jnp.maximum(_layernorm(e, vrow(_GE), vrow(_BGE)), 0.0)
    # (1, bblk) exit row directly (contract last dims; no transpose materialized).
    exrow = lax.dot_general(vrow(_WE2), e, (((1,), (1,)), ((), ())),
                            preferred_element_type=f32) + vtab[_BO:_BO + 1, 0:1]
    # Scatter exit logits to lanes b*N (exact 0/1 products).
    exscat = jnp.dot(exrow, bsel, preferred_element_type=f32)    # (1, bn)

    # Edgewise dots: full gram (MXU-cheap), zero cross-graph blocks, compact the
    # per-graph diagonal blocks into a lane-dense (Nr, bn) slab with one selector
    # matmul (cmp[i, b*N + j] = gram[b*N+i, b*N+j]).
    gram = lax.dot_general(xb, xb, (((1,), (1,)), ((), ())),
                           preferred_element_type=f32)           # (bn, bn)
    cmp = jnp.dot(sel, gram * mask, preferred_element_type=f32) * inv_sqrt_h

    out_ref[...] = cmp
    # Fold the (unscaled) exit logit into the unused lower-triangular slot
    # (N-1, 0) of each graph's block -> no second output DMA / masked-store column.
    is_block_start = sel[0:1, :] > 0.0
    out_ref[pl.ds(n_nodes - 1, 1), :] = jnp.where(
        is_block_start, exscat, cmp[n_nodes - 1:n_nodes, :])


def ring_policy_forward(node_ids, adj, params):
    """node_ids: [B, N] int32 node indices; adj: [B, N, N] float32 (symmetric)."""
    B, N = node_ids.shape
    assert N >= 2
    H = params["w1"].shape[0]
    inv_sqrt_h = 1.0 / math.sqrt(H)

    # ---- glue: embedding gather ----
    h0 = jnp.take(params["emb"], node_ids, axis=0)               # (B, N, D)
    D = h0.shape[-1]

    # ---- generation-aware per-step graph block; pad the batch ----
    target_rows, min_grid = _grid_params()
    bblk = _choose_bblk(B, N, target_rows, min_grid)
    grid = -(-B // bblk)
    b_pad = grid * bblk
    if b_pad != B:
        h0 = jnp.pad(h0, ((0, b_pad - B), (0, 0), (0, 0)))
        adj = jnp.pad(adj, ((0, b_pad - B), (0, 0), (0, 0)))
    bn = bblk * N                       # always a multiple of 128 (lane dense)
    nr = -(-N // 8) * 8                 # sublane-aligned compact-output rows

    # Row-stacked node features (bf16 MXU operands) and compact adjacency.
    h_flat = h0.reshape(b_pad * N, D).astype(jnp.bfloat16)
    adjc = adj.reshape(b_pad * N, N).astype(jnp.float32)         # tiny, exact 0/1

    # ---- hoisted constant selector / averaging / mask matrices (fetched once) ----
    col = jnp.arange(bn, dtype=jnp.int32)
    blk = col // N
    sel = ((col[None, :] % N) ==
           jnp.arange(nr, dtype=jnp.int32)[:, None]).astype(jnp.float32)   # (Nr, bn)
    bsel = (blk[None, :] ==
            jnp.arange(bblk, dtype=jnp.int32)[:, None]).astype(jnp.float32)  # (bblk, bn)
    mask = (blk[:, None] == blk[None, :]).astype(jnp.float32)    # (bn, bn)

    # ---- pack the 18 parameter tensors into 2 kernel inputs ----
    wsq = jnp.stack([params["w1"], params["w2"], params["w3"], params["w4"],
                     params["we1"]]).astype(jnp.bfloat16)        # (5, H, H)
    vec = jnp.stack([params["b1"], params["g1"], params["be1"], params["b2"],
                     params["b3"], params["b4"], params["gn"], params["bn"],
                     params["beh"], params["ge"], params["bge"], params["we2"],
                     jnp.full((H,), params["bo"], jnp.float32)])  # (13, H) f32

    kernel = functools.partial(_ring_policy_kernel, n_nodes=N,
                               inv_sqrt_h=inv_sqrt_h, inv_n=1.0 / N)

    cmp = pl.pallas_call(
        kernel,
        out_shape=jax.ShapeDtypeStruct((grid * nr, bn), jnp.float32),
        grid_spec=pltpu.PrefetchScalarGridSpec(
            num_scalar_prefetch=0,
            grid=(grid,),
            in_specs=[
                pl.BlockSpec((bn, D), lambda g: (g, 0)),          # h_flat (bf16)
                pl.BlockSpec((bn, N), lambda g: (g, 0)),          # compact adjacency
                pl.BlockSpec((bn, bn), lambda g: (0, 0)),         # block mask (const)
                pl.BlockSpec((nr, bn), lambda g: (0, 0)),         # node selector (const)
                pl.BlockSpec((bblk, bn), lambda g: (0, 0)),       # graph selector (const)
                pl.BlockSpec((5, H, H), lambda g: (0, 0, 0)),     # square weights (bf16)
                pl.BlockSpec((13, H), lambda g: (0, 0)),          # biases / LN params
            ],
            out_specs=pl.BlockSpec((nr, bn), lambda g: (g, 0)),
        ),
        compiler_params=pltpu.CompilerParams(
            dimension_semantics=("parallel",),
            vmem_limit_bytes=32 * 1024 * 1024),
    )(h_flat, adjc, mask, sel, bsel, wsq, vec)

    # ---- glue: compact slab -> per-graph (N, N) blocks; triu edge gather ----
    cmp_g = cmp.reshape(grid, nr, bblk, N)
    dot = jnp.transpose(cmp_g, (0, 2, 1, 3))[:, :, :N, :].reshape(b_pad, N, N)[:B]
    exit_logit = dot[:, N - 1, 0:1]                  # folded slot (unscaled)
    i0, i1 = jnp.triu_indices(N, k=1)
    edge_actions = dot[:, i0, i1]                    # (B, N*(N-1)/2), already /sqrt(H)
    return jnp.concatenate([edge_actions, exit_logit], axis=-1)


def init_params(key, n_nodes, embedding_dim):
    D = H = embedding_dim
    ks = jax.random.split(key, 13)

    def u(k, fan_in, shape):
        bound = 1.0 / math.sqrt(fan_in)
        return jax.random.uniform(k, shape, jnp.float32, -bound, bound)

    return {
        "emb": jax.random.normal(ks[0], (n_nodes, D), jnp.float32),
        # GINConv inner MLP: Linear -> LayerNorm -> ReLU -> Linear
        "w1": u(ks[1], D, (D, H)), "b1": u(ks[2], D, (H,)),
        "g1": jnp.ones((H,), jnp.float32), "be1": jnp.zeros((H,), jnp.float32),
        "w2": u(ks[3], H, (H, H)), "b2": u(ks[4], H, (H,)),
        # conv_blks[1]: Linear -> ReLU -> Linear
        "w3": u(ks[5], H, (H, H)), "b3": u(ks[6], H, (H,)),
        "w4": u(ks[7], H, (H, H)), "b4": u(ks[8], H, (H,)),
        # self.norm
        "gn": jnp.ones((H,), jnp.float32), "bn": jnp.zeros((H,), jnp.float32),
        # exit MLP: Linear -> LayerNorm -> ReLU -> Linear(H, 1)
        "we1": u(ks[9], H, (H, H)), "beh": u(ks[10], H, (H,)),
        "ge": jnp.ones((H,), jnp.float32), "bge": jnp.zeros((H,), jnp.float32),
        "we2": u(ks[11], H, (H,)), "bo": u(ks[12], H, ()),
    }


if __name__ == "__main__":
    n_nodes = 8
    embedding_dim = 32
    batch_size = 32          # 2 grid steps of 16 graphs (v5e) or per-gen bblk choice

    key = jax.random.PRNGKey(0)
    params = init_params(key, n_nodes, embedding_dim)

    # Node features: each graph has node ids 0..n_nodes-1.
    node_ids = jnp.tile(jnp.arange(n_nodes, dtype=jnp.int32)[None, :], (batch_size, 1))

    # Dense symmetric adjacency per graph: alternate full / partial rings.
    def ring_adj(num_edges):
        a = jnp.zeros((n_nodes, n_nodes), jnp.float32)
        for e in range(num_edges):
            i, j = e, (e + 1) % n_nodes
            a = a.at[i, j].set(1.0).at[j, i].set(1.0)
        return a

    adj = jnp.stack(
        [ring_adj(n_nodes if b % 2 == 0 else (b % n_nodes)) for b in range(batch_size)],
        axis=0)                                                    # (B, N, N)

    out = jax.jit(ring_policy_forward)(node_ids, adj, params)
    out = jax.block_until_ready(out)

    expected_cols = n_nodes * (n_nodes - 1) // 2 + 1
    assert out.shape == (batch_size, expected_cols), out.shape
    assert bool(jnp.all(jnp.isfinite(out)))
    # TODO(synk): validate against the PyTorch reference with relaxed tolerance
    # (bf16 MXU operands / one-pass LN variance change numerics slightly).
    print("KERNEL_OK")
</pallas_src>

<mosaic_0001>
module attributes {stable_mosaic.version = 11 : i64} {
  func.func private @main(%arg0: i32) attributes {dimension_semantics = [#tpu.dimension_semantics<core_parallel>], iteration_bounds = array<i64: 2>, tpu.core_type = #tpu.core_type<sc_scalar_subcore>, window_params = []} {
    return
  }
}

module attributes {stable_mosaic.version = 11 : i64} {
  func.func private @main(%arg0: i32) attributes {dimension_semantics = [#tpu.dimension_semantics<core_parallel>], iteration_bounds = array<i64: 2>, tpu.core_type = #tpu.core_type<sc_scalar_subcore>, window_params = []} {
    return
  }
}

module attributes {stable_mosaic.version = 11 : i64} {
  func.func @_ring_policy_kernel(%arg0: i32, %arg1: memref<128x32xbf16, #tpu.memory_space<vmem>>, %arg2: memref<128x8xf32, #tpu.memory_space<vmem>>, %arg3: memref<128x128xf32, #tpu.memory_space<vmem>>, %arg4: memref<8x128xf32, #tpu.memory_space<vmem>>, %arg5: memref<16x128xf32, #tpu.memory_space<vmem>>, %arg6: memref<5x32x32xbf16, #tpu.memory_space<vmem>>, %arg7: memref<13x32xf32, #tpu.memory_space<vmem>>, %arg8: memref<8x128xf32, #tpu.memory_space<vmem>>) attributes {dimension_semantics = [#tpu.dimension_semantics<parallel>], iteration_bounds = array<i64: 2>, scalar_prefetch = 0 : i64, scratch_operands = 0 : i64, tpu.core_type = #tpu.core_type<tc>, window_params = [{transform_indices = @transform_0, window_bounds = array<i64: 128, 32>}, {transform_indices = @transform_1, window_bounds = array<i64: 128, 8>}, {pipeline_mode = #tpu.pipeline_mode<synchronous>, transform_indices = @transform_2, window_bounds = array<i64: 128, 128>}, {pipeline_mode = #tpu.pipeline_mode<synchronous>, transform_indices = @transform_3, window_bounds = array<i64: 8, 128>}, {pipeline_mode = #tpu.pipeline_mode<synchronous>, transform_indices = @transform_4, window_bounds = array<i64: 16, 128>}, {pipeline_mode = #tpu.pipeline_mode<synchronous>, transform_indices = @transform_5, window_bounds = array<i64: 5, 32, 32>}, {pipeline_mode = #tpu.pipeline_mode<synchronous>, transform_indices = @transform_6, window_bounds = array<i64: 13, 32>}, {transform_indices = @transform_7, window_bounds = array<i64: 8, 128>}]} {
    %c0 = arith.constant 0 : index
    %c0_0 = arith.constant 0 : index
    %0 = vector.load %arg1[%c0, %c0_0] : memref<128x32xbf16, #tpu.memory_space<vmem>>, vector<128x32xbf16>
    %c0_1 = arith.constant 0 : index
    %c0_2 = arith.constant 0 : index
    %1 = vector.load %arg3[%c0_1, %c0_2] : memref<128x128xf32, #tpu.memory_space<vmem>>, vector<128x128xf32>
    %c0_3 = arith.constant 0 : index
    %c0_4 = arith.constant 0 : index
    %2 = vector.load %arg4[%c0_3, %c0_4] : memref<8x128xf32, #tpu.memory_space<vmem>>, vector<8x128xf32>
    %c0_5 = arith.constant 0 : index
    %c0_6 = arith.constant 0 : index
    %3 = vector.load %arg5[%c0_5, %c0_6] : memref<16x128xf32, #tpu.memory_space<vmem>>, vector<16x128xf32>
    %c0_7 = arith.constant 0 : index
    %c0_8 = arith.constant 0 : index
    %4 = vector.load %arg7[%c0_7, %c0_8] : memref<13x32xf32, #tpu.memory_space<vmem>>, vector<13x32xf32>
    %c0_9 = arith.constant 0 : index
    %c0_10 = arith.constant 0 : index
    %5 = vector.load %arg2[%c0_9, %c0_10] : memref<128x8xf32, #tpu.memory_space<vmem>>, vector<128x8xf32>
    %cst = arith.constant dense<0.000000e+00> : vector<128x128xf32>
    %6 = tpu.matmul %5, %2, %cst {dimension_numbers = #tpu.dot_dimension_numbers<[1], [0], [0], [1], [0, 0, 1, 1], [], []>} : vector<128x8xf32>, vector<8x128xf32>, vector<128x128xf32> -> vector<128x128xf32>
    %7 = arith.mulf %6, %1 : vector<128x128xf32>
    %8 = arith.truncf %7 : vector<128x128xf32> to vector<128x128xbf16>
    %9 = arith.extf %0 : vector<128x32xbf16> to vector<128x32xf32>
    %cst_11 = arith.constant dense<0.000000e+00> : vector<128x32xf32>
    %10 = tpu.matmul %8, %0, %cst_11 {dimension_numbers = #tpu.dot_dimension_numbers<[1], [0], [0], [1], [0, 0, 1, 1], [], []>} : vector<128x128xbf16>, vector<128x32xbf16>, vector<128x32xf32> -> vector<128x32xf32>
    %11 = arith.addf %9, %10 : vector<128x32xf32>
    %12 = arith.truncf %11 : vector<128x32xf32> to vector<128x32xbf16>
    %c0_12 = arith.constant 0 : index
    %c0_13 = arith.constant 0 : index
    %c0_14 = arith.constant 0 : index
    %13 = vector.load %arg6[%c0_12, %c0_13, %c0_14] : memref<5x32x32xbf16, #tpu.memory_space<vmem>>, vector<1x32x32xbf16>
    %14 = vector.shape_cast %13 : vector<1x32x32xbf16> to vector<32x32xbf16>
    %cst_15 = arith.constant dense<0.000000e+00> : vector<128x32xf32>
    %15 = tpu.matmul %12, %14, %cst_15 {dimension_numbers = #tpu.dot_dimension_numbers<[1], [0], [0], [1], [0, 0, 1, 1], [], []>} : vector<128x32xbf16>, vector<32x32xbf16>, vector<128x32xf32> -> vector<128x32xf32>
    %16 = vector.extract_strided_slice %4 {offsets = [0, 0], sizes = [1, 32], strides = [1, 1]} : vector<13x32xf32> to vector<1x32xf32>
    %17 = vector.broadcast %16 : vector<1x32xf32> to vector<128x32xf32>
    %18 = arith.addf %15, %17 : vector<128x32xf32>
    %19 = vector.extract_strided_slice %4 {offsets = [1, 0], sizes = [1, 32], strides = [1, 1]} : vector<13x32xf32> to vector<1x32xf32>
    %20 = vector.extract_strided_slice %4 {offsets = [2, 0], sizes = [1, 32], strides = [1, 1]} : vector<13x32xf32> to vector<1x32xf32>
    %cst_16 = arith.constant dense<0.000000e+00> : vector<128xf32>
    %21 = vector.multi_reduction <add>, %18, %cst_16 [1] : vector<128x32xf32> to vector<128xf32>
    %22 = vector.shape_cast %21 : vector<128xf32> to vector<128x1xf32>
    %cst_17 = arith.constant 3.200000e+01 : f32
    %23 = vector.broadcast %cst_17 : f32 to vector<128x1xf32>
    %24 = arith.divf %22, %23 : vector<128x1xf32>
    %25 = arith.mulf %18, %18 : vector<128x32xf32>
    %cst_18 = arith.constant dense<0.000000e+00> : vector<128xf32>
    %26 = vector.multi_reduction <add>, %25, %cst_18 [1] : vector<128x32xf32> to vector<128xf32>
    %27 = vector.shape_cast %26 : vector<128xf32> to vector<128x1xf32>
    %cst_19 = arith.constant 3.200000e+01 : f32
    %28 = vector.broadcast %cst_19 : f32 to vector<128x1xf32>
    %29 = arith.divf %27, %28 : vector<128x1xf32>
    %30 = arith.mulf %24, %24 : vector<128x1xf32>
    %31 = arith.subf %29, %30 : vector<128x1xf32>
    %cst_20 = arith.constant 0.000000e+00 : f32
    %32 = vector.broadcast %cst_20 : f32 to vector<128x1xf32>
    %33 = arith.maximumf %31, %32 : vector<128x1xf32>
    %34 = vector.broadcast %24 : vector<128x1xf32> to vector<128x32xf32>
    %35 = arith.subf %18, %34 : vector<128x32xf32>
    %cst_21 = arith.constant 9.99999974E-6 : f32
    %36 = vector.broadcast %cst_21 : f32 to vector<128x1xf32>
    %37 = arith.addf %33, %36 : vector<128x1xf32>
    %38 = math.rsqrt %37 : vector<128x1xf32>
    %39 = vector.broadcast %38 : vector<128x1xf32> to vector<128x32xf32>
    %40 = arith.mulf %35, %39 : vector<128x32xf32>
    %41 = vector.broadcast %19 : vector<1x32xf32> to vector<128x32xf32>
    %42 = arith.mulf %40, %41 : vector<128x32xf32>
    %43 = vector.broadcast %20 : vector<1x32xf32> to vector<128x32xf32>
    %44 = arith.addf %42, %43 : vector<128x32xf32>
    %cst_22 = arith.constant 0.000000e+00 : f32
    %45 = vector.broadcast %cst_22 : f32 to vector<128x32xf32>
    %46 = arith.maximumf %44, %45 : vector<128x32xf32>
    %47 = arith.truncf %46 : vector<128x32xf32> to vector<128x32xbf16>
    %c1 = arith.constant 1 : index
    %c0_23 = arith.constant 0 : index
    %c0_24 = arith.constant 0 : index
    %48 = vector.load %arg6[%c1, %c0_23, %c0_24] : memref<5x32x32xbf16, #tpu.memory_space<vmem>>, vector<1x32x32xbf16>
    %49 = vector.shape_cast %48 : vector<1x32x32xbf16> to vector<32x32xbf16>
    %cst_25 = arith.constant dense<0.000000e+00> : vector<128x32xf32>
    %50 = tpu.matmul %47, %49, %cst_25 {dimension_numbers = #tpu.dot_dimension_numbers<[1], [0], [0], [1], [0, 0, 1, 1], [], []>} : vector<128x32xbf16>, vector<32x32xbf16>, vector<128x32xf32> -> vector<128x32xf32>
    %51 = vector.extract_strided_slice %4 {offsets = [3, 0], sizes = [1, 32], strides = [1, 1]} : vector<13x32xf32> to vector<1x32xf32>
    %52 = vector.broadcast %51 : vector<1x32xf32> to vector<128x32xf32>
    %53 = arith.addf %50, %52 : vector<128x32xf32>
    %54 = arith.truncf %53 : vector<128x32xf32> to vector<128x32xbf16>
    %c2 = arith.constant 2 : index
    %c0_26 = arith.constant 0 : index
    %c0_27 = arith.constant 0 : index
    %55 = vector.load %arg6[%c2, %c0_26, %c0_27] : memref<5x32x32xbf16, #tpu.memory_space<vmem>>, vector<1x32x32xbf16>
    %56 = vector.shape_cast %55 : vector<1x32x32xbf16> to vector<32x32xbf16>
    %cst_28 = arith.constant dense<0.000000e+00> : vector<128x32xf32>
    %57 = tpu.matmul %54, %56, %cst_28 {dimension_numbers = #tpu.dot_dimension_numbers<[1], [0], [0], [1], [0, 0, 1, 1], [], []>} : vector<128x32xbf16>, vector<32x32xbf16>, vector<128x32xf32> -> vector<128x32xf32>
    %58 = vector.extract_strided_slice %4 {offsets = [4, 0], sizes = [1, 32], strides = [1, 1]} : vector<13x32xf32> to vector<1x32xf32>
    %59 = vector.broadcast %58 : vector<1x32xf32> to vector<128x32xf32>
    %60 = arith.addf %57, %59 : vector<128x32xf32>
    %cst_29 = arith.constant 0.000000e+00 : f32
    %61 = vector.broadcast %cst_29 : f32 to vector<128x32xf32>
    %62 = arith.maximumf %60, %61 : vector<128x32xf32>
    %63 = arith.truncf %62 : vector<128x32xf32> to vector<128x32xbf16>
    %c3 = arith.constant 3 : index
    %c0_30 = arith.constant 0 : index
    %c0_31 = arith.constant 0 : index
    %64 = vector.load %arg6[%c3, %c0_30, %c0_31] : memref<5x32x32xbf16, #tpu.memory_space<vmem>>, vector<1x32x32xbf16>
    %65 = vector.shape_cast %64 : vector<1x32x32xbf16> to vector<32x32xbf16>
    %cst_32 = arith.constant dense<0.000000e+00> : vector<128x32xf32>
    %66 = tpu.matmul %63, %65, %cst_32 {dimension_numbers = #tpu.dot_dimension_numbers<[1], [0], [0], [1], [0, 0, 1, 1], [], []>} : vector<128x32xbf16>, vector<32x32xbf16>, vector<128x32xf32> -> vector<128x32xf32>
    %67 = vector.extract_strided_slice %4 {offsets = [5, 0], sizes = [1, 32], strides = [1, 1]} : vector<13x32xf32> to vector<1x32xf32>
    %68 = vector.broadcast %67 : vector<1x32xf32> to vector<128x32xf32>
    %69 = arith.addf %66, %68 : vector<128x32xf32>
    %70 = vector.extract_strided_slice %4 {offsets = [6, 0], sizes = [1, 32], strides = [1, 1]} : vector<13x32xf32> to vector<1x32xf32>
    %71 = vector.extract_strided_slice %4 {offsets = [7, 0], sizes = [1, 32], strides = [1, 1]} : vector<13x32xf32> to vector<1x32xf32>
    %cst_33 = arith.constant dense<0.000000e+00> : vector<128xf32>
    %72 = vector.multi_reduction <add>, %69, %cst_33 [1] : vector<128x32xf32> to vector<128xf32>
    %73 = vector.shape_cast %72 : vector<128xf32> to vector<128x1xf32>
    %cst_34 = arith.constant 3.200000e+01 : f32
    %74 = vector.broadcast %cst_34 : f32 to vector<128x1xf32>
    %75 = arith.divf %73, %74 : vector<128x1xf32>
    %76 = arith.mulf %69, %69 : vector<128x32xf32>
    %cst_35 = arith.constant dense<0.000000e+00> : vector<128xf32>
    %77 = vector.multi_reduction <add>, %76, %cst_35 [1] : vector<128x32xf32> to vector<128xf32>
    %78 = vector.shape_cast %77 : vector<128xf32> to vector<128x1xf32>
    %cst_36 = arith.constant 3.200000e+01 : f32
    %79 = vector.broadcast %cst_36 : f32 to vector<128x1xf32>
    %80 = arith.divf %78, %79 : vector<128x1xf32>
    %81 = arith.mulf %75, %75 : vector<128x1xf32>
    %82 = arith.subf %80, %81 : vector<128x1xf32>
    %cst_37 = arith.constant 0.000000e+00 : f32
    %83 = vector.broadcast %cst_37 : f32 to vector<128x1xf32>
    %84 = arith.maximumf %82, %83 : vector<128x1xf32>
    %85 = vector.broadcast %75 : vector<128x1xf32> to vector<128x32xf32>
    %86 = arith.subf %69, %85 : vector<128x32xf32>
    %cst_38 = arith.constant 9.99999974E-6 : f32
    %87 = vector.broadcast %cst_38 : f32 to vector<128x1xf32>
    %88 = arith.addf %84, %87 : vector<128x1xf32>
    %89 = math.rsqrt %88 : vector<128x1xf32>
    %90 = vector.broadcast %89 : vector<128x1xf32> to vector<128x32xf32>
    %91 = arith.mulf %86, %90 : vector<128x32xf32>
    %92 = vector.broadcast %70 : vector<1x32xf32> to vector<128x32xf32>
    %93 = arith.mulf %91, %92 : vector<128x32xf32>
    %94 = vector.broadcast %71 : vector<1x32xf32> to vector<128x32xf32>
    %95 = arith.addf %93, %94 : vector<128x32xf32>
    %96 = arith.truncf %95 : vector<128x32xf32> to vector<128x32xbf16>
    %97 = arith.truncf %3 : vector<16x128xf32> to vector<16x128xbf16>
    %cst_39 = arith.constant dense<0.000000e+00> : vector<16x32xf32>
    %98 = tpu.matmul %97, %96, %cst_39 {dimension_numbers = #tpu.dot_dimension_numbers<[1], [0], [0], [1], [0, 0, 1, 1], [], []>} : vector<16x128xbf16>, vector<128x32xbf16>, vector<16x32xf32> -> vector<16x32xf32>
    %cst_40 = arith.constant 1.250000e-01 : f32
    %99 = vector.broadcast %cst_40 : f32 to vector<16x32xf32>
    %100 = arith.mulf %98, %99 : vector<16x32xf32>
    %101 = arith.truncf %100 : vector<16x32xf32> to vector<16x32xbf16>
    %c4 = arith.constant 4 : index
    %c0_41 = arith.constant 0 : index
    %c0_42 = arith.constant 0 : index
    %102 = vector.load %arg6[%c4, %c0_41, %c0_42] : memref<5x32x32xbf16, #tpu.memory_space<vmem>>, vector<1x32x32xbf16>
    %103 = vector.shape_cast %102 : vector<1x32x32xbf16> to vector<32x32xbf16>
    %cst_43 = arith.constant dense<0.000000e+00> : vector<16x32xf32>
    %104 = tpu.matmul %101, %103, %cst_43 {dimension_numbers = #tpu.dot_dimension_numbers<[1], [0], [0], [1], [0, 0, 1, 1], [], []>} : vector<16x32xbf16>, vector<32x32xbf16>, vector<16x32xf32> -> vector<16x32xf32>
    %105 = vector.extract_strided_slice %4 {offsets = [8, 0], sizes = [1, 32], strides = [1, 1]} : vector<13x32xf32> to vector<1x32xf32>
    %106 = vector.broadcast %105 : vector<1x32xf32> to vector<16x32xf32>
    %107 = arith.addf %104, %106 : vector<16x32xf32>
    %108 = vector.extract_strided_slice %4 {offsets = [9, 0], sizes = [1, 32], strides = [1, 1]} : vector<13x32xf32> to vector<1x32xf32>
    %109 = vector.extract_strided_slice %4 {offsets = [10, 0], sizes = [1, 32], strides = [1, 1]} : vector<13x32xf32> to vector<1x32xf32>
    %cst_44 = arith.constant dense<0.000000e+00> : vector<16xf32>
    %110 = vector.multi_reduction <add>, %107, %cst_44 [1] : vector<16x32xf32> to vector<16xf32>
    %111 = vector.shape_cast %110 : vector<16xf32> to vector<16x1xf32>
    %cst_45 = arith.constant 3.200000e+01 : f32
    %112 = vector.broadcast %cst_45 : f32 to vector<16x1xf32>
    %113 = arith.divf %111, %112 : vector<16x1xf32>
    %114 = arith.mulf %107, %107 : vector<16x32xf32>
    %cst_46 = arith.constant dense<0.000000e+00> : vector<16xf32>
    %115 = vector.multi_reduction <add>, %114, %cst_46 [1] : vector<16x32xf32> to vector<16xf32>
    %116 = vector.shape_cast %115 : vector<16xf32> to vector<16x1xf32>
    %cst_47 = arith.constant 3.200000e+01 : f32
    %117 = vector.broadcast %cst_47 : f32 to vector<16x1xf32>
    %118 = arith.divf %116, %117 : vector<16x1xf32>
    %119 = arith.mulf %113, %113 : vector<16x1xf32>
    %120 = arith.subf %118, %119 : vector<16x1xf32>
    %cst_48 = arith.constant 0.000000e+00 : f32
    %121 = vector.broadcast %cst_48 : f32 to vector<16x1xf32>
    %122 = arith.maximumf %120, %121 : vector<16x1xf32>
    %123 = vector.broadcast %113 : vector<16x1xf32> to vector<16x32xf32>
    %124 = arith.subf %107, %123 : vector<16x32xf32>
    %cst_49 = arith.constant 9.99999974E-6 : f32
    %125 = vector.broadcast %cst_49 : f32 to vector<16x1xf32>
    %126 = arith.addf %122, %125 : vector<16x1xf32>
    %127 = math.rsqrt %126 : vector<16x1xf32>
    %128 = vector.broadcast %127 : vector<16x1xf32> to vector<16x32xf32>
    %129 = arith.mulf %124, %128 : vector<16x32xf32>
    %130 = vector.broadcast %108 : vector<1x32xf32> to vector<16x32xf32>
    %131 = arith.mulf %129, %130 : vector<16x32xf32>
    %132 = vector.broadcast %109 : vector<1x32xf32> to vector<16x32xf32>
    %133 = arith.addf %131, %132 : vector<16x32xf32>
    %cst_50 = arith.constant 0.000000e+00 : f32
    %134 = vector.broadcast %cst_50 : f32 to vector<16x32xf32>
    %135 = arith.maximumf %133, %134 : vector<16x32xf32>
    %136 = vector.extract_strided_slice %4 {offsets = [11, 0], sizes = [1, 32], strides = [1, 1]} : vector<13x32xf32> to vector<1x32xf32>
    %cst_51 = arith.constant dense<0.000000e+00> : vector<1x16xf32>
    %137 = tpu.matmul %136, %135, %cst_51 {dimension_numbers = #tpu.dot_dimension_numbers<[1], [1], [0], [0], [0, 0, 1, 0], [], []>} : vector<1x32xf32>, vector<16x32xf32>, vector<1x16xf32> -> vector<1x16xf32>
    %138 = vector.extract_strided_slice %4 {offsets = [12, 0], sizes = [1, 1], strides = [1, 1]} : vector<13x32xf32> to vector<1x1xf32>
    %139 = vector.broadcast %138 : vector<1x1xf32> to vector<1x16xf32>
    %140 = arith.addf %137, %139 : vector<1x16xf32>
    %cst_52 = arith.constant dense<0.000000e+00> : vector<1x128xf32>
    %141 = tpu.matmul %140, %3, %cst_52 {dimension_numbers = #tpu.dot_dimension_numbers<[1], [0], [0], [1], [0, 0, 1, 1], [], []>} : vector<1x16xf32>, vector<16x128xf32>, vector<1x128xf32> -> vector<1x128xf32>
    %cst_53 = arith.constant dense<0.000000e+00> : vector<128x128xf32>
    %142 = tpu.matmul %96, %96, %cst_53 {dimension_numbers = #tpu.dot_dimension_numbers<[1], [1], [0], [0], [0, 0, 1, 0], [], []>} : vector<128x32xbf16>, vector<128x32xbf16>, vector<128x128xf32> -> vector<128x128xf32>
    %143 = arith.mulf %142, %1 : vector<128x128xf32>
    %cst_54 = arith.constant dense<0.000000e+00> : vector<8x128xf32>
    %144 = tpu.matmul %2, %143, %cst_54 {dimension_numbers = #tpu.dot_dimension_numbers<[1], [0], [0], [1], [0, 0, 1, 1], [], []>} : vector<8x128xf32>, vector<128x128xf32>, vector<8x128xf32> -> vector<8x128xf32>
    %cst_55 = arith.constant 0.176776692 : f32
    %145 = vector.broadcast %cst_55 : f32 to vector<8x128xf32>
    %146 = arith.mulf %144, %145 : vector<8x128xf32>
    %c0_56 = arith.constant 0 : index
    %c0_57 = arith.constant 0 : index
    %147 = vector.load %arg8[%c0_56, %c0_57] : memref<8x128xf32, #tpu.memory_space<vmem>>, vector<8x128xf32>
    tpu.vector_store %arg8[%c0_56, %c0_57], %146 {strides = array<i32>} : memref<8x128xf32, #tpu.memory_space<vmem>>, vector<8x128xf32>,
    %148 = vector.extract_strided_slice %2 {offsets = [0, 0], sizes = [1, 128], strides = [1, 1]} : vector<8x128xf32> to vector<1x128xf32>
    %cst_58 = arith.constant 0.000000e+00 : f32
    %149 = vector.broadcast %cst_58 : f32 to vector<1x128xf32>
    %150 = arith.cmpf ogt, %148, %149 : vector<1x128xf32>
    %151 = vector.extract_strided_slice %146 {offsets = [7, 0], sizes = [1, 128], strides = [1, 1]} : vector<8x128xf32> to vector<1x128xf32>
    %152 = arith.select %150, %141, %151 : vector<1x128xi1>, vector<1x128xf32>
    %c7 = arith.constant 7 : index
    %c0_59 = arith.constant 0 : index
    %153 = vector.load %arg8[%c7, %c0_59] : memref<8x128xf32, #tpu.memory_space<vmem>>, vector<1x128xf32>
    tpu.vector_store %arg8[%c7, %c0_59], %152 {strides = array<i32>} : memref<8x128xf32, #tpu.memory_space<vmem>>, vector<1x128xf32>,
    return
  }
  func.func @transform_0(%arg0: i32) -> (i32, i32) {
    %c0_i32 = arith.constant 0 : i32
    %c0_i32_0 = arith.constant 0 : i32
    return %arg0, %c0_i32 : i32, i32
  }
  func.func @transform_1(%arg0: i32) -> (i32, i32) {
    %c0_i32 = arith.constant 0 : i32
    %c0_i32_0 = arith.constant 0 : i32
    return %arg0, %c0_i32 : i32, i32
  }
  func.func @transform_2(%arg0: i32) -> (i32, i32) {
    %c0_i32 = arith.constant 0 : i32
    %c0_i32_0 = arith.constant 0 : i32
    %c0_i32_1 = arith.constant 0 : i32
    return %c0_i32, %c0_i32_0 : i32, i32
  }
  func.func @transform_3(%arg0: i32) -> (i32, i32) {
    %c0_i32 = arith.constant 0 : i32
    %c0_i32_0 = arith.constant 0 : i32
    %c0_i32_1 = arith.constant 0 : i32
    return %c0_i32, %c0_i32_0 : i32, i32
  }
  func.func @transform_4(%arg0: i32) -> (i32, i32) {
    %c0_i32 = arith.constant 0 : i32
    %c0_i32_0 = arith.constant 0 : i32
    %c0_i32_1 = arith.constant 0 : i32
    return %c0_i32, %c0_i32_0 : i32, i32
  }
  func.func @transform_5(%arg0: i32) -> (i32, i32, i32) {
    %c0_i32 = arith.constant 0 : i32
    %c0_i32_0 = arith.constant 0 : i32
    %c0_i32_1 = arith.constant 0 : i32
    %c0_i32_2 = arith.constant 0 : i32
    return %c0_i32, %c0_i32_0, %c0_i32_1 : i32, i32, i32
  }
  func.func @transform_6(%arg0: i32) -> (i32, i32) {
    %c0_i32 = arith.constant 0 : i32
    %c0_i32_0 = arith.constant 0 : i32
    %c0_i32_1 = arith.constant 0 : i32
    return %c0_i32, %c0_i32_0 : i32, i32
  }
  func.func @transform_7(%arg0: i32) -> (i32, i32) {
    %c0_i32 = arith.constant 0 : i32
    %c0_i32_0 = arith.constant 0 : i32
    return %arg0, %c0_i32 : i32, i32
  }
}

</mosaic_0001>

<llo_original>
// kernel: ring_policy_forward.1
$region0: #{ring_policy_forward.1}
  #allocation0 [shape = 'u32[]', space=smem, size = 0x4, offset = 0x4, fixed_abs, tag = 'smem constant byte address 0x4 - core index']
  #allocation1 [shape = 'u32[144,128]{1,0:T(1,128)}', space=vmem, size = 0x12000, scoped, tag = 'internal scratch']
  %s0 = inlined_call_operand.vmem [shape: bf16[256,32], index: 0, kind: input, shape index: {}]
  %s1 = inlined_call_operand.vmem [shape: f32[256,8], index: 1, kind: input, shape index: {}]
  %s2 = inlined_call_operand.vmem [shape: f32[128,128], index: 2, kind: input, shape index: {}]
  %s3 = inlined_call_operand.vmem [shape: f32[8,128], index: 3, kind: input, shape index: {}]
  %s4 = inlined_call_operand.vmem [shape: f32[16,128], index: 4, kind: input, shape index: {}]
  %s5 = inlined_call_operand.vmem [shape: bf16[5,32,32], index: 5, kind: input, shape index: {}]
  %s6 = inlined_call_operand.vmem [shape: f32[13,32], index: 6, kind: input, shape index: {}]
  %s7 = inlined_call_operand.vmem [shape: f32[16,128], index: 7, kind: output, shape index: {}]
  %s8 = sld [smem:[#allocation0]]
  $region61: #{ring_policy_forward.1} parent=0
    _
  %s10 = ssub.s32 1, %s8
  %s11 = scalar_select 0, %s10, %s8
  loop: start=0, step=1, limit=4
  $region2: #{ring_policy_forward.1} parent=0 // loop_pre_header
    _
  $region3: #{ring_policy_forward.1} parent=0 // loop_header
    %s13 = sphi 0, %s17
    %p14 = scmp.ge.s32.totalorder %s13, 4
    %s23 = sphi 0, %s25
    %s26 = sphi 0, %s23
    %s27 = sphi 0, %s26
    %s43 = sphi 0, %s27
    %s49 = sphi 0, %s51
    %s52 = sphi 0, %s49
    %s53 = sphi 0, %s52
    %s69 = sphi 0, %s53
    %s73 = sphi 0, %s73
    %s75 = sphi 0, %s73
    %s76 = sphi 0, %s75
    %s90 = sphi 0, %s76
    %s94 = sphi 0, %s94
    %s96 = sphi 0, %s94
    %s97 = sphi 0, %s96
    %s111 = sphi 0, %s97
    %s115 = sphi 0, %s115
    %s117 = sphi 0, %s115
    %s118 = sphi 0, %s117
    %s132 = sphi 0, %s118
    %s136 = sphi 0, %s136
    %s138 = sphi 0, %s136
    %s139 = sphi 0, %s138
    %s153 = sphi 0, %s139
    %s157 = sphi 0, %s157
    %s159 = sphi 0, %s157
    %s160 = sphi 0, %s159
    %s174 = sphi 0, %s160
    %s180 = sphi 0, %s182
    %s183 = sphi 0, %s180
    %s184 = sphi 0, %s183
    %s200 = sphi 0, %s184
  $region4: #{ring_policy_forward.1} parent=0 // loop_header_branch
    %16 = sbr.rel (%p14) target = $region8
  $region5: #{ring_policy_forward.1} parent=0 // loop_body
    %s18 = ssub.s32 %s13, 1
    %s19 = ssub.s32 %s13, 2
    %s20 = sadd.s32 %s13, 1
    %s21 = ssub.s32 %s13, %s20
    %p22 = scmp.eq.s32.totalorder %s21, 0
    %s24 = sadd.s32 %s23, 1
    %s25 = scalar_select %p22, %s23, %s24
    %p28 = pneg %p22
    %p29 = scmp.eq.s32.totalorder %s13, 1
    %p30 = por %p28, %p29
    %p31 = scmp.ne.s32.totalorder %s23, %s26
    %p32 = scmp.eq.s32.totalorder %s13, 0
    %p33 = por %p31, %p32
    %p34 = scmp.ne.s32.totalorder %s23, %s26
    %p35 = scmp.eq.s32.totalorder %s18, 1
    %p36 = por %p34, %p35
    %p37 = scmp.ne.s32.totalorder %s26, %s27
    %p38 = scmp.eq.s32.totalorder %s18, 0
    %p39 = por %p37, %p38
    %p40 = scmp.ne.s32.totalorder %s26, %s27
    %p41 = scmp.eq.s32.totalorder %s19, 1
    %p42 = por %p40, %p41
    %p44 = scmp.ne.s32.totalorder %s27, %s43
    %p45 = scmp.eq.s32.totalorder %s19, 0
    %p46 = por %p44, %p45
    %s47 = ssub.s32 %s13, %s20
    %p48 = scmp.eq.s32.totalorder %s47, 0
    %s50 = sadd.s32 %s49, 1
    %s51 = scalar_select %p48, %s49, %s50
    %p54 = pneg %p48
    %p55 = scmp.eq.s32.totalorder %s13, 1
    %p56 = por %p54, %p55
    %p57 = scmp.ne.s32.totalorder %s49, %s52
    %p58 = scmp.eq.s32.totalorder %s13, 0
    %p59 = por %p57, %p58
    %p60 = scmp.ne.s32.totalorder %s49, %s52
    %p61 = scmp.eq.s32.totalorder %s18, 1
    %p62 = por %p60, %p61
    %p63 = scmp.ne.s32.totalorder %s52, %s53
    %p64 = scmp.eq.s32.totalorder %s18, 0
    %p65 = por %p63, %p64
    %p66 = scmp.ne.s32.totalorder %s52, %s53
    %p67 = scmp.eq.s32.totalorder %s19, 1
    %p68 = por %p66, %p67
    %p70 = scmp.ne.s32.totalorder %s53, %s69
    %p71 = scmp.eq.s32.totalorder %s19, 0
    %p72 = por %p70, %p71
    %s74 = sadd.s32 %s73, 1
    %p77 = scmp.eq.s32.totalorder %s13, 1
    %p78 = scmp.ne.s32.totalorder %s73, %s75
    %p79 = scmp.eq.s32.totalorder %s13, 0
    %p80 = por %p78, %p79
    %p81 = scmp.ne.s32.totalorder %s73, %s75
    %p82 = scmp.eq.s32.totalorder %s18, 1
    %p83 = por %p81, %p82
    %p84 = scmp.ne.s32.totalorder %s75, %s76
    %p85 = scmp.eq.s32.totalorder %s18, 0
    %p86 = por %p84, %p85
    %p87 = scmp.ne.s32.totalorder %s75, %s76
    %p88 = scmp.eq.s32.totalorder %s19, 1
    %p89 = por %p87, %p88
    %p91 = scmp.ne.s32.totalorder %s76, %s90
    %p92 = scmp.eq.s32.totalorder %s19, 0
    %p93 = por %p91, %p92
    %s95 = sadd.s32 %s94, 1
    %p98 = scmp.eq.s32.totalorder %s13, 1
    %p99 = scmp.ne.s32.totalorder %s94, %s96
    %p100 = scmp.eq.s32.totalorder %s13, 0
    %p101 = por %p99, %p100
    %p102 = scmp.ne.s32.totalorder %s94, %s96
    %p103 = scmp.eq.s32.totalorder %s18, 1
    %p104 = por %p102, %p103
    %p105 = scmp.ne.s32.totalorder %s96, %s97
    %p106 = scmp.eq.s32.totalorder %s18, 0
    %p107 = por %p105, %p106
    %p108 = scmp.ne.s32.totalorder %s96, %s97
    %p109 = scmp.eq.s32.totalorder %s19, 1
    %p110 = por %p108, %p109
    %p112 = scmp.ne.s32.totalorder %s97, %s111
    %p113 = scmp.eq.s32.totalorder %s19, 0
    %p114 = por %p112, %p113
    %s116 = sadd.s32 %s115, 1
    %p119 = scmp.eq.s32.totalorder %s13, 1
    %p120 = scmp.ne.s32.totalorder %s115, %s117
    %p121 = scmp.eq.s32.totalorder %s13, 0
    %p122 = por %p120, %p121
    %p123 = scmp.ne.s32.totalorder %s115, %s117
    %p124 = scmp.eq.s32.totalorder %s18, 1
    %p125 = por %p123, %p124
    %p126 = scmp.ne.s32.totalorder %s117, %s118
    %p127 = scmp.eq.s32.totalorder %s18, 0
    %p128 = por %p126, %p127
    %p129 = scmp.ne.s32.totalorder %s117, %s118
    %p130 = scmp.eq.s32.totalorder %s19, 1
    %p131 = por %p129, %p130
    %p133 = scmp.ne.s32.totalorder %s118, %s132
    %p134 = scmp.eq.s32.totalorder %s19, 0
    %p135 = por %p133, %p134
    %s137 = sadd.s32 %s136, 1
    %p140 = scmp.eq.s32.totalorder %s13, 1
    %p141 = scmp.ne.s32.totalorder %s136, %s138
    %p142 = scmp.eq.s32.totalorder %s13, 0
    %p143 = por %p141, %p142
    %p144 = scmp.ne.s32.totalorder %s136, %s138
    %p145 = scmp.eq.s32.totalorder %s18, 1
    %p146 = por %p144, %p145
    %p147 = scmp.ne.s32.totalorder %s138, %s139
    %p148 = scmp.eq.s32.totalorder %s18, 0
    %p149 = por %p147, %p148
    %p150 = scmp.ne.s32.totalorder %s138, %s139
    %p151 = scmp.eq.s32.totalorder %s19, 1
    %p152 = por %p150, %p151
    %p154 = scmp.ne.s32.totalorder %s139, %s153
    %p155 = scmp.eq.s32.totalorder %s19, 0
    %p156 = por %p154, %p155
    %s158 = sadd.s32 %s157, 1
    %p161 = scmp.eq.s32.totalorder %s13, 1
    %p162 = scmp.ne.s32.totalorder %s157, %s159
    %p163 = scmp.eq.s32.totalorder %s13, 0
    %p164 = por %p162, %p163
    %p165 = scmp.ne.s32.totalorder %s157, %s159
    %p166 = scmp.eq.s32.totalorder %s18, 1
    %p167 = por %p165, %p166
    %p168 = scmp.ne.s32.totalorder %s159, %s160
    %p169 = scmp.eq.s32.totalorder %s18, 0
    %p170 = por %p168, %p169
    %p171 = scmp.ne.s32.totalorder %s159, %s160
    %p172 = scmp.eq.s32.totalorder %s19, 1
    %p173 = por %p171, %p172
    %p175 = scmp.ne.s32.totalorder %s160, %s174
    %p176 = scmp.eq.s32.totalorder %s19, 0
    %p177 = por %p175, %p176
    %s178 = ssub.s32 %s13, %s20
    %p179 = scmp.eq.s32.totalorder %s178, 0
    %s181 = sadd.s32 %s180, 1
    %s182 = scalar_select %p179, %s180, %s181
    %p185 = pneg %p179
    %p186 = scmp.eq.s32.totalorder %s13, 1
    %p187 = por %p185, %p186
    %p188 = scmp.ne.s32.totalorder %s180, %s183
    %p189 = scmp.eq.s32.totalorder %s13, 0
    %p190 = por %p188, %p189
    %p191 = scmp.ne.s32.totalorder %s180, %s183
    %p192 = scmp.eq.s32.totalorder %s18, 1
    %p193 = por %p191, %p192
    %p194 = scmp.ne.s32.totalorder %s183, %s184
    %p195 = scmp.eq.s32.totalorder %s18, 0
    %p196 = por %p194, %p195
    %p197 = scmp.ne.s32.totalorder %s183, %s184
    %p198 = scmp.eq.s32.totalorder %s19, 1
    %p199 = por %p197, %p198
    %p201 = scmp.ne.s32.totalorder %s184, %s200
    %p202 = scmp.eq.s32.totalorder %s19, 0
    %p203 = por %p201, %p202
    %p204 = scmp.le.s32.totalorder 1, %s13
    %p205 = scmp.lt.s32.totalorder %s13, 3
    %p206 = pnand %p204, %p205
    %p207 = pneg %p206
    // Predicated region
    $region9: #{ring_policy_forward.1} parent=5 // pred_check
      _
    $region10: #{ring_policy_forward.1} parent=5 // pred_check_branch
      %209 = sbr.rel (%p206) target = $region12
    $region11: #{ring_policy_forward.1} parent=5 // pred_region
      %s210 = ssub.s32 %s13, 1
      // Predicated region
      $region13: #{ring_policy_forward.1} parent=11 // pred_check
        %p211 = pneg %p86
      $region14: #{ring_policy_forward.1} parent=11 // pred_check_branch
        %213 = sbr.rel (%p211) target = $region16
      $region15: #{ring_policy_forward.1} parent=11 // pred_region
        _
      $region16: #{ring_policy_forward.1} parent=11 // pred_fallthru
        _
      // Predicated region
      $region17: #{ring_policy_forward.1} parent=11 // pred_check
        %p214 = pneg %p107
      $region18: #{ring_policy_forward.1} parent=11 // pred_check_branch
        %216 = sbr.rel (%p214) target = $region20
      $region19: #{ring_policy_forward.1} parent=11 // pred_region
        _
      $region20: #{ring_policy_forward.1} parent=11 // pred_fallthru
        _
      // Predicated region
      $region21: #{ring_policy_forward.1} parent=11 // pred_check
        %p217 = pneg %p128
      $region22: #{ring_policy_forward.1} parent=11 // pred_check_branch
        %219 = sbr.rel (%p217) target = $region24
      $region23: #{ring_policy_forward.1} parent=11 // pred_region
        _
      $region24: #{ring_policy_forward.1} parent=11 // pred_fallthru
        _
      // Predicated region
      $region25: #{ring_policy_forward.1} parent=11 // pred_check
        %p220 = pneg %p149
      $region26: #{ring_policy_forward.1} parent=11 // pred_check_branch
        %222 = sbr.rel (%p220) target = $region28
      $region27: #{ring_policy_forward.1} parent=11 // pred_region
        _
      $region28: #{ring_policy_forward.1} parent=11 // pred_fallthru
        _
      // Predicated region
      $region29: #{ring_policy_forward.1} parent=11 // pred_check
        %p223 = pneg %p170
      $region30: #{ring_policy_forward.1} parent=11 // pred_check_branch
        %225 = sbr.rel (%p223) target = $region32
      $region31: #{ring_policy_forward.1} parent=11 // pred_region
        _
      $region32: #{ring_policy_forward.1} parent=11 // pred_fallthru
        _
    $region12: #{ring_policy_forward.1} parent=5 // pred_fallthru
      _
    %p226 = scmp.lt.s32.totalorder %s13, 2
    // Predicated region
    $region33: #{ring_policy_forward.1} parent=5 // pred_check
      %p227 = pneg %p226
    $region34: #{ring_policy_forward.1} parent=5 // pred_check_branch
      %229 = sbr.rel (%p227) target = $region36
    $region35: #{ring_policy_forward.1} parent=5 // pred_region
      // Predicated region
      $region37: #{ring_policy_forward.1} parent=35 // pred_check
        %p230 = pneg %p33
      $region38: #{ring_policy_forward.1} parent=35 // pred_check_branch
        %232 = sbr.rel (%p230) target = $region40
      $region39: #{ring_policy_forward.1} parent=35 // pred_region
        %s233 = smul.u32 16, %s13
        %p234 = scmp.lt.s32.totalorder %s233, 31
        %s235 = scalar_select %p234, %s233, 31
        %s236 = smul.addr %s235, 4
        %s237 = scalar_lea.vmem %s0, %s236
        %s238 = smul.u32 16, %s13
      $region40: #{ring_policy_forward.1} parent=35 // pred_fallthru
        _
      // Predicated region
      $region41: #{ring_policy_forward.1} parent=35 // pred_check
        %p239 = pneg %p59
      $region42: #{ring_policy_forward.1} parent=35 // pred_check_branch
        %241 = sbr.rel (%p239) target = $region44
      $region43: #{ring_policy_forward.1} parent=35 // pred_region
        %s242 = smul.u32 16, %s13
        %p243 = scmp.lt.s32.totalorder %s242, 31
        %s244 = scalar_select %p243, %s242, 31
        %s245 = smul.addr %s244, 8
        %s246 = scalar_lea.vmem %s1, %s245
        %s247 = smul.u32 16, %s13
      $region44: #{ring_policy_forward.1} parent=35 // pred_fallthru
        _
    $region36: #{ring_policy_forward.1} parent=5 // pred_fallthru
      _
    %p248 = scmp.le.s32.totalorder 1, %s13
    %p249 = scmp.lt.s32.totalorder %s13, 3
    %p250 = pnand %p248, %p249
    %p251 = pneg %p250
    // Predicated region
    $region45: #{ring_policy_forward.1} parent=5 // pred_check
      _
    $region46: #{ring_policy_forward.1} parent=5 // pred_check_branch
      %253 = sbr.rel (%p250) target = $region48
    $region47: #{ring_policy_forward.1} parent=5 // pred_region
      %s254 = ssub.s32 %s13, 1
      %s255 = smul.u32 16, %s18
      %p256 = scmp.lt.s32.totalorder %s255, 31
      %s257 = scalar_select %p256, %s255, 31
      %s258 = smul.addr %s257, 4
      %s259 = scalar_lea.vmem %s0, %s258
      %p260 = pneg %p39
      %p261 = pneg %p36
      %s262 = smul.u32 16, %s18
      %p263 = scmp.lt.s32.totalorder %s262, 31
      %s264 = scalar_select %p263, %s262, 31
      %s265 = smul.addr %s264, 8
      %s266 = scalar_lea.vmem %s1, %s265
      %p267 = pneg %p65
      %p268 = pneg %p62
      %p269 = pneg %p86
      %p270 = pneg %p83
      %p271 = pneg %p107
      %p272 = pneg %p104
      %p273 = pneg %p128
      %p274 = pneg %p125
      %p275 = pneg %p149
      %p276 = pneg %p146
      %p277 = pneg %p170
      %p278 = pneg %p167
      %p279 = pneg %p196
      %p280 = pneg %p193
      %p281 = scmp.lt.s32.totalorder %s18, 1
      %s282 = scalar_select %p281, %s18, 1
      %s283 = smul.addr %s282, 8
      %s284 = scalar_lea.vmem %s7, %s283
      %s285 = smul.u32 16, %s18
      %p286 = scmp.lt.s32.totalorder %s285, 31
      %s287 = scalar_select %p286, %s285, 31
      %s288 = smul.addr %s287, 4
      %s289 = scalar_lea.vmem %s0, %s288
      %s290 = smul.u32 16, %s18
      %s291 = smul.u32 16, %s18
      %p292 = scmp.lt.s32.totalorder %s291, 31
      %s293 = scalar_select %p292, %s291, 31
      %s294 = smul.addr %s293, 8
      %s295 = scalar_lea.vmem %s1, %s294
      %s296 = smul.u32 16, %s18
      %p297 = scmp.lt.s32.totalorder %s18, 1
      %s298 = scalar_select %p297, %s18, 1
      %s299 = smul.addr %s298, 8
      %s300 = scalar_lea.vmem %s7, %s299
      %v302 = vld [vmem:[%s289] sm:$0xf]
      %v303 = vld [vmem:[%s289 + $0x4] sm:$0xf]
      %v304 = vld [vmem:[%s289 + $0x8] sm:$0xf]
      %v305 = vld [vmem:[%s289 + $0xc] sm:$0xf]
      %v306 = vld [vmem:[%s289 + $0x10] sm:$0xf]
      %v307 = vld [vmem:[%s289 + $0x14] sm:$0xf]
      %v308 = vld [vmem:[%s289 + $0x18] sm:$0xf]
      %v309 = vld [vmem:[%s289 + $0x1c] sm:$0xf]
      %v310 = vld [vmem:[%s289 + $0x20] sm:$0xf]
      %v311 = vld [vmem:[%s289 + $0x24] sm:$0xf]
      %v312 = vld [vmem:[%s289 + $0x28] sm:$0xf]
      %v313 = vld [vmem:[%s289 + $0x2c] sm:$0xf]
      %v314 = vld [vmem:[%s289 + $0x30] sm:$0xf]
      %v315 = vld [vmem:[%s289 + $0x34] sm:$0xf]
      %v316 = vld [vmem:[%s289 + $0x38] sm:$0xf]
      %v317 = vld [vmem:[%s289 + $0x3c] sm:$0xf]
      %v318 = vld [vmem:[%s2] sm:$0xff]
      %v319 = vld [vmem:[%s2 + $0x8] sm:$0xff]
      %v320 = vld [vmem:[%s2 + $0x10] sm:$0xff]
      %v321 = vld [vmem:[%s2 + $0x18] sm:$0xff]
      %v322 = vld [vmem:[%s2 + $0x20] sm:$0xff]
      %v323 = vld [vmem:[%s2 + $0x28] sm:$0xff]
      %v324 = vld [vmem:[%s2 + $0x30] sm:$0xff]
      %v325 = vld [vmem:[%s2 + $0x38] sm:$0xff]
      %v326 = vld [vmem:[%s2 + $0x40] sm:$0xff]
      %v327 = vld [vmem:[%s2 + $0x48] sm:$0xff]
      %v328 = vld [vmem:[%s2 + $0x50] sm:$0xff]
      %v329 = vld [vmem:[%s2 + $0x58] sm:$0xff]
      %v330 = vld [vmem:[%s2 + $0x60] sm:$0xff]
      %v331 = vld [vmem:[%s2 + $0x68] sm:$0xff]
      %v332 = vld [vmem:[%s2 + $0x70] sm:$0xff]
      %v333 = vld [vmem:[%s2 + $0x78] sm:$0xff]
      %v334 = vld [vmem:[%s3] sm:$0xff]
      %v335 = vld [vmem:[%s4] sm:$0xff]
      %v336 = vld [vmem:[%s4 + $0x8] sm:$0xff]
      %v337 = vld [vmem:[%s6] sm:$0xff]
      %v338 = vld [vmem:[%s6 + $0x8] sm:$0x1f]
      %v339 = vld [vmem:[%s295] sm:$0xff]
      %v340 = vld [vmem:[%s295 + $0x8] sm:$0xff]
      %v341 = vld [vmem:[%s295 + $0x10] sm:$0xff]
      %v342 = vld [vmem:[%s295 + $0x18] sm:$0xff]
      %v343 = vld [vmem:[%s295 + $0x20] sm:$0xff]
      %v344 = vld [vmem:[%s295 + $0x28] sm:$0xff]
      %v345 = vld [vmem:[%s295 + $0x30] sm:$0xff]
      %v346 = vld [vmem:[%s295 + $0x38] sm:$0xff]
      %v347 = vld [vmem:[%s295 + $0x40] sm:$0xff]
      %v348 = vld [vmem:[%s295 + $0x48] sm:$0xff]
      %v349 = vld [vmem:[%s295 + $0x50] sm:$0xff]
      %v350 = vld [vmem:[%s295 + $0x58] sm:$0xff]
      %v351 = vld [vmem:[%s295 + $0x60] sm:$0xff]
      %v352 = vld [vmem:[%s295 + $0x68] sm:$0xff]
      %v353 = vld [vmem:[%s295 + $0x70] sm:$0xff]
      %v354 = vld [vmem:[%s295 + $0x78] sm:$0xff]
      %vm355 = vcmask 64512
      %v357 = vsel %vm355, %v339, 0
      %v360 = vsel %vm355, %v340, 0
      %v363 = vsel %vm355, %v341, 0
      %v366 = vsel %vm355, %v342, 0
      %v369 = vsel %vm355, %v343, 0
      %v372 = vsel %vm355, %v344, 0
      %v375 = vsel %vm355, %v345, 0
      %v378 = vsel %vm355, %v346, 0
      %v381 = vsel %vm355, %v347, 0
      %v384 = vsel %vm355, %v348, 0
      %v387 = vsel %vm355, %v349, 0
      %v390 = vsel %vm355, %v350, 0
      %v393 = vsel %vm355, %v351, 0
      %v396 = vsel %vm355, %v352, 0
      %v399 = vsel %vm355, %v353, 0
      %v402 = vsel %vm355, %v354, 0
      %404 = vmatprep.subr.mxu0 0.0
      %405 = vmatpush1.msra.mxu0 %v334
      %406 = vmatprep.subr.mxu0 0.0
      %407 = vmatpush1.msra.mxu0 0.0
      %408 = vmatprep.subr.mxu0 0.0
      %409 = vmatpush1.msra.mxu0 0.0
      %410 = vmatprep.subr.mxu0 0.0
      %411 = vmatpush1.msra.mxu0 0.0
      %412 = vmatprep.subr.mxu0 0.0
      %413 = vmatpush1.msra.mxu0 0.0
      %414 = vmatprep.subr.mxu0 0.0
      %415 = vmatpush1.msra.mxu0 0.0
      %416 = vmatprep.subr.mxu0 0.0
      %417 = vmatpush1.msra.mxu0 0.0
      %418 = vmatprep.subr.mxu0 0.0
      %419 = vmatpush1.msra.mxu0 0.0
      %420 = vmatprep.subr.mxu0 0.0
      %421 = vmatpush1.msra.mxu0 0.0
      %422 = vmatprep.subr.mxu0 0.0
      %423 = vmatpush1.msra.mxu0 0.0
      %424 = vmatprep.subr.mxu0 0.0
      %425 = vmatpush1.msra.mxu0 0.0
      %426 = vmatprep.subr.mxu0 0.0
      %427 = vmatpush1.msra.mxu0 0.0
      %428 = vmatprep.subr.mxu0 0.0
      %429 = vmatpush1.msra.mxu0 0.0
      %430 = vmatprep.subr.mxu0 0.0
      %431 = vmatpush1.msra.mxu0 0.0
      %432 = vmatprep.subr.mxu0 0.0
      %433 = vmatpush1.msra.mxu0 0.0
      %434 = vmatprep.subr.mxu0 0.0
      %435 = vmatpush1.msra.mxu0 0.0
      %436 = vmatprep.subr.mxu0 0.0
      %437 = vmatpush1.msra.mxu0 0.0
      %438 = vmatprep.subr.mxu0 0.0
      %439 = vmatpush1.msra.mxu0 0.0
      %440 = vmatprep.subr.mxu0 0.0
      %441 = vmatpush1.msra.mxu0 0.0
      %442 = vmatprep.subr.mxu0 0.0
      %443 = vmatpush1.msra.mxu0 0.0
      %444 = vmatprep.subr.mxu0 0.0
      %445 = vmatpush1.msra.mxu0 0.0
      %446 = vmatprep.subr.mxu0 0.0
      %447 = vmatpush1.msra.mxu0 0.0
      %448 = vmatprep.subr.mxu0 0.0
      %449 = vmatpush1.msra.mxu0 0.0
      %450 = vmatprep.subr.mxu0 0.0
      %451 = vmatpush1.msra.mxu0 0.0
      %452 = vmatprep.subr.mxu0 0.0
      %453 = vmatpush1.msra.mxu0 0.0
      %454 = vmatprep.subr.mxu0 0.0
      %455 = vmatpush1.msra.mxu0 0.0
      %456 = vmatprep.subr.mxu0 0.0
      %457 = vmatpush1.msra.mxu0 0.0
      %458 = vmatprep.subr.mxu0 0.0
      %459 = vmatpush1.msra.mxu0 0.0
      %460 = vmatprep.subr.mxu0 0.0
      %461 = vmatpush1.msra.mxu0 0.0
      %462 = vmatprep.subr.mxu0 0.0
      %463 = vmatpush1.msra.mxu0 0.0
      %464 = vmatprep.subr.mxu0 0.0
      %465 = vmatpush1.msra.mxu0 0.0
      %466 = vmatprep.subr.mxu0 0.0
      %467 = vmatpush1.msra.mxu0 0.0
      %468 = vmatprep.mubr.f32.mxu0 0.0
      %469 = vmatmul.mubr.f32.gmra.mrb[0].mxu0 %v357
      %v470 = vpop.f32.mrb[0].mxu0
      %v471 = vadd.f32 0.0, %v470
      %v472 = vpop.f32.mrb[0].mxu0
      %473 = vmatprep.mubr.f32.mxu0 0.0
      %474 = vmatmul.mubr.f32.gmra.mrb[0].mxu0 %v360
      %v475 = vpop.f32.mrb[0].mxu0
      %v476 = vadd.f32 0.0, %v475
      %v477 = vpop.f32.mrb[0].mxu0
      %478 = vmatprep.mubr.f32.mxu0 0.0
      %479 = vmatmul.mubr.f32.gmra.mrb[0].mxu0 %v363
      %v480 = vpop.f32.mrb[0].mxu0
      %v481 = vadd.f32 0.0, %v480
      %v482 = vpop.f32.mrb[0].mxu0
      %483 = vmatprep.mubr.f32.mxu0 0.0
      %484 = vmatmul.mubr.f32.gmra.mrb[0].mxu0 %v366
      %v485 = vpop.f32.mrb[0].mxu0
      %v486 = vadd.f32 0.0, %v485
      %v487 = vpop.f32.mrb[0].mxu0
      %488 = vmatprep.mubr.f32.mxu0 0.0
      %489 = vmatmul.mubr.f32.gmra.mrb[0].mxu0 %v369
      %v490 = vpop.f32.mrb[0].mxu0
      %v491 = vadd.f32 0.0, %v490
      %v492 = vpop.f32.mrb[0].mxu0
      %493 = vmatprep.mubr.f32.mxu0 0.0
      %494 = vmatmul.mubr.f32.gmra.mrb[0].mxu0 %v372
      %v495 = vpop.f32.mrb[0].mxu0
      %v496 = vadd.f32 0.0, %v495
      %v497 = vpop.f32.mrb[0].mxu0
      %498 = vmatprep.mubr.f32.mxu0 0.0
      %499 = vmatmul.mubr.f32.gmra.mrb[0].mxu0 %v375
      %v500 = vpop.f32.mrb[0].mxu0
      %v501 = vadd.f32 0.0, %v500
      %v502 = vpop.f32.mrb[0].mxu0
      %503 = vmatprep.mubr.f32.mxu0 0.0
      %504 = vmatmul.mubr.f32.gmra.mrb[0].mxu0 %v378
      %v505 = vpop.f32.mrb[0].mxu0
      %v506 = vadd.f32 0.0, %v505
      %v507 = vpop.f32.mrb[0].mxu0
      %508 = vmatprep.mubr.f32.mxu0 0.0
      %509 = vmatmul.mubr.f32.gmra.mrb[0].mxu0 %v381
      %v510 = vpop.f32.mrb[0].mxu0
      %v511 = vadd.f32 0.0, %v510
      %v512 = vpop.f32.mrb[0].mxu0
      %513 = vmatprep.mubr.f32.mxu0 0.0
      %514 = vmatmul.mubr.f32.gmra.mrb[0].mxu0 %v384
      %v515 = vpop.f32.mrb[0].mxu0
      %v516 = vadd.f32 0.0, %v515
      %v517 = vpop.f32.mrb[0].mxu0
      %518 = vmatprep.mubr.f32.mxu0 0.0
      %519 = vmatmul.mubr.f32.gmra.mrb[0].mxu0 %v387
      %v520 = vpop.f32.mrb[0].mxu0
      %v521 = vadd.f32 0.0, %v520
      %v522 = vpop.f32.mrb[0].mxu0
      %523 = vmatprep.mubr.f32.mxu0 0.0
      %524 = vmatmul.mubr.f32.gmra.mrb[0].mxu0 %v390
      %v525 = vpop.f32.mrb[0].mxu0
      %v526 = vadd.f32 0.0, %v525
      %v527 = vpop.f32.mrb[0].mxu0
      %528 = vmatprep.mubr.f32.mxu0 0.0
      %529 = vmatmul.mubr.f32.gmra.mrb[0].mxu0 %v393
      %v530 = vpop.f32.mrb[0].mxu0
      %v531 = vadd.f32 0.0, %v530
      %v532 = vpop.f32.mrb[0].mxu0
      %533 = vmatprep.mubr.f32.mxu0 0.0
      %534 = vmatmul.mubr.f32.gmra.mrb[0].mxu0 %v396
      %v535 = vpop.f32.mrb[0].mxu0
      %v536 = vadd.f32 0.0, %v535
      %v537 = vpop.f32.mrb[0].mxu0
      %538 = vmatprep.mubr.f32.mxu0 0.0
      %539 = vmatmul.mubr.f32.gmra.mrb[0].mxu0 %v399
      %v540 = vpop.f32.mrb[0].mxu0
      %v541 = vadd.f32 0.0, %v540
      %v542 = vpop.f32.mrb[0].mxu0
      %543 = vmatprep.mubr.f32.mxu0 0.0
      %544 = vmatmul.mubr.f32.gmra.mrb[0].mxu0 %v402
      %v545 = vpop.f32.mrb[0].mxu0
      %v546 = vadd.f32 0.0, %v545
      %v547 = vpop.f32.mrb[0].mxu0
      %548 = vdwg.mxu0
      %v549 = vmul.f32 %v471, %v318
      %v550 = vmul.f32 %v476, %v319
      %v551 = vmul.f32 %v481, %v320
      %v552 = vmul.f32 %v486, %v321
      %v553 = vmul.f32 %v491, %v322
      %v554 = vmul.f32 %v496, %v323
      %v555 = vmul.f32 %v501, %v324
      %v556 = vmul.f32 %v506, %v325
      %v557 = vmul.f32 %v511, %v326
      %v558 = vmul.f32 %v516, %v327
      %v559 = vmul.f32 %v521, %v328
      %v560 = vmul.f32 %v526, %v329
      %v561 = vmul.f32 %v531, %v330
      %v562 = vmul.f32 %v536, %v331
      %v563 = vmul.f32 %v541, %v332
      %v564 = vmul.f32 %v546, %v333
      %v565 = vpack.c.bf16 %v550, %v549
      %v566 = vpack.c.bf16 %v552, %v551
      %v567 = vpack.c.bf16 %v554, %v553
      %v568 = vpack.c.bf16 %v556, %v555
      %v569 = vpack.c.bf16 %v558, %v557
      %v570 = vpack.c.bf16 %v560, %v559
      %v571 = vpack.c.bf16 %v562, %v561
      %v572 = vpack.c.bf16 %v564, %v563
      %v573 = vunpack.c.l.bf16 %v302
      %v574 = vunpack.c.l.bf16 %v303
      %v575 = vunpack.c.l.bf16 %v304
      %v576 = vunpack.c.l.bf16 %v305
      %v577 = vunpack.c.l.bf16 %v306
      %v578 = vunpack.c.l.bf16 %v307
      %v579 = vunpack.c.l.bf16 %v308
      %v580 = vunpack.c.l.bf16 %v309
      %v581 = vunpack.c.l.bf16 %v310
      %v582 = vunpack.c.l.bf16 %v311
      %v583 = vunpack.c.l.bf16 %v312
      %v584 = vunpack.c.l.bf16 %v313
      %v585 = vunpack.c.l.bf16 %v314
      %v586 = vunpack.c.l.bf16 %v315
      %v587 = vunpack.c.l.bf16 %v316
      %v588 = vunpack.c.l.bf16 %v317
      %v605 = vunpack.c.l.b16 %v302
      %v606 = vunpack.c.l.b16 %v303
      %v607 = vunpack.c.l.b16 %v304
      %v608 = vunpack.c.l.b16 %v305
      %v609 = vunpack.c.l.b16 %v306
      %v610 = vunpack.c.l.b16 %v307
      %v611 = vunpack.c.l.b16 %v308
      %v612 = vunpack.c.l.b16 %v309
      %v613 = vunpack.c.l.b16 %v310
      %v614 = vunpack.c.l.b16 %v311
      %v615 = vunpack.c.l.b16 %v312
      %v616 = vunpack.c.l.b16 %v313
      %v617 = vunpack.c.l.b16 %v314
      %v618 = vunpack.c.l.b16 %v315
      %v619 = vunpack.c.l.b16 %v316
      %v620 = vunpack.c.l.b16 %v317
      %v621 = vpack.c.b16 %v606, %v605
      %v622 = vpack.c.b16 %v608, %v607
      %v623 = vpack.c.b16 %v610, %v609
      %v624 = vpack.c.b16 %v612, %v611
      %v625 = vpack.c.b16 %v614, %v613
      %v626 = vpack.c.b16 %v616, %v615
      %v627 = vpack.c.b16 %v618, %v617
      %v628 = vpack.c.b16 %v620, %v619
      %637 = vmatprep.subr.bf16.mxu0 0
      %638 = vmatpush1.bf16.msra.mxu0 %v621
      %639 = vmatprep.subr.bf16.mxu0 0
      %640 = vmatpush1.bf16.msra.mxu0 %v622
      %641 = vmatprep.subr.bf16.mxu0 0
      %642 = vmatpush1.bf16.msra.mxu0 %v623
      %643 = vmatprep.subr.bf16.mxu0 0
      %644 = vmatpush1.bf16.msra.mxu0 %v624
      %645 = vmatprep.subr.bf16.mxu0 0
      %646 = vmatpush1.bf16.msra.mxu0 %v625
      %647 = vmatprep.subr.bf16.mxu0 0
      %648 = vmatpush1.bf16.msra.mxu0 %v626
      %649 = vmatprep.subr.bf16.mxu0 0
      %650 = vmatpush1.bf16.msra.mxu0 %v627
      %651 = vmatprep.subr.bf16.mxu0 0
      %652 = vmatpush1.bf16.msra.mxu0 %v628
      %653 = vmatprep.subr.bf16.mxu0 0
      %654 = vmatpush1.bf16.msra.mxu0 0
      %655 = vmatprep.subr.bf16.mxu0 0
      %656 = vmatpush1.bf16.msra.mxu0 0
      %657 = vmatprep.subr.bf16.mxu0 0
      %658 = vmatpush1.bf16.msra.mxu0 0
      %659 = vmatprep.subr.bf16.mxu0 0
      %660 = vmatpush1.bf16.msra.mxu0 0
      %661 = vmatprep.subr.bf16.mxu0 0
      %662 = vmatpush1.bf16.msra.mxu0 0
      %663 = vmatprep.subr.bf16.mxu0 0
      %664 = vmatpush1.bf16.msra.mxu0 0
      %665 = vmatprep.subr.bf16.mxu0 0
      %666 = vmatpush1.bf16.msra.mxu0 0
      %667 = vmatprep.subr.bf16.mxu0 0
      %668 = vmatpush1.bf16.msra.mxu0 0
      %669 = vmatprep.mubr.bf16.mxu0 0
      %670 = vmatmul.mubr.bf16.gmra.mrb[0].mxu0 %v565
      %v671 = vpop.f32.mrb[0].mxu0
      %v672 = vadd.f32 0.0, %v671
      %v673 = vpop.f32.mrb[0].mxu0
      %v674 = vpop.f32.mrb[0].mxu0
      %v675 = vadd.f32 0.0, %v674
      %v676 = vpop.f32.mrb[0].mxu0
      %677 = vmatprep.mubr.bf16.mxu0 0
      %678 = vmatmul.mubr.bf16.gmra.mrb[0].mxu0 %v566
      %v679 = vpop.f32.mrb[0].mxu0
      %v680 = vadd.f32 0.0, %v679
      %v681 = vpop.f32.mrb[0].mxu0
      %v682 = vpop.f32.mrb[0].mxu0
      %v683 = vadd.f32 0.0, %v682
      %v684 = vpop.f32.mrb[0].mxu0
      %685 = vmatprep.mubr.bf16.mxu0 0
      %686 = vmatmul.mubr.bf16.gmra.mrb[0].mxu0 %v567
      %v687 = vpop.f32.mrb[0].mxu0
      %v688 = vadd.f32 0.0, %v687
      %v689 = vpop.f32.mrb[0].mxu0
      %v690 = vpop.f32.mrb[0].mxu0
      %v691 = vadd.f32 0.0, %v690
      %v692 = vpop.f32.mrb[0].mxu0
      %693 = vmatprep.mubr.bf16.mxu0 0
      %694 = vmatmul.mubr.bf16.gmra.mrb[0].mxu0 %v568
      %v695 = vpop.f32.mrb[0].mxu0
      %v696 = vadd.f32 0.0, %v695
      %v697 = vpop.f32.mrb[0].mxu0
      %v698 = vpop.f32.mrb[0].mxu0
      %v699 = vadd.f32 0.0, %v698
      %v700 = vpop.f32.mrb[0].mxu0
      %701 = vmatprep.mubr.bf16.mxu0 0
      %702 = vmatmul.mubr.bf16.gmra.mrb[0].mxu0 %v569
      %v703 = vpop.f32.mrb[0].mxu0
      %v704 = vadd.f32 0.0, %v703
      %v705 = vpop.f32.mrb[0].mxu0
      %v706 = vpop.f32.mrb[0].mxu0
      %v707 = vadd.f32 0.0, %v706
      %v708 = vpop.f32.mrb[0].mxu0
      %709 = vmatprep.mubr.bf16.mxu0 0
      %710 = vmatmul.mubr.bf16.gmra.mrb[0].mxu0 %v570
      %v711 = vpop.f32.mrb[0].mxu0
      %v712 = vadd.f32 0.0, %v711
      %v713 = vpop.f32.mrb[0].mxu0
      %v714 = vpop.f32.mrb[0].mxu0
      %v715 = vadd.f32 0.0, %v714
      %v716 = vpop.f32.mrb[0].mxu0
      %717 = vmatprep.mubr.bf16.mxu0 0
      %718 = vmatmul.mubr.bf16.gmra.mrb[0].mxu0 %v571
      %v719 = vpop.f32.mrb[0].mxu0
      %v720 = vadd.f32 0.0, %v719
      %v721 = vpop.f32.mrb[0].mxu0
      %v722 = vpop.f32.mrb[0].mxu0
      %v723 = vadd.f32 0.0, %v722
      %v724 = vpop.f32.mrb[0].mxu0
      %725 = vmatprep.mubr.bf16.mxu0 0
      %726 = vmatmul.mubr.bf16.gmra.mrb[0].mxu0 %v572
      %v727 = vpop.f32.mrb[0].mxu0
      %v728 = vadd.f32 0.0, %v727
      %v729 = vpop.f32.mrb[0].mxu0
      %v730 = vpop.f32.mrb[0].mxu0
      %v731 = vadd.f32 0.0, %v730
      %v732 = vpop.f32.mrb[0].mxu0
      %733 = vdwg.mxu0
      %v734 = vadd.f32 %v573, %v672
      %v735 = vadd.f32 %v574, %v675
      %v736 = vadd.f32 %v575, %v680
      %v737 = vadd.f32 %v576, %v683
      %v738 = vadd.f32 %v577, %v688
      %v739 = vadd.f32 %v578, %v691
      %v740 = vadd.f32 %v579, %v696
      %v741 = vadd.f32 %v580, %v699
      %v742 = vadd.f32 %v581, %v704
      %v743 = vadd.f32 %v582, %v707
      %v744 = vadd.f32 %v583, %v712
      %v745 = vadd.f32 %v584, %v715
      %v746 = vadd.f32 %v585, %v720
      %v747 = vadd.f32 %v586, %v723
      %v748 = vadd.f32 %v587, %v728
      %v749 = vadd.f32 %v588, %v731
      %v750 = vpack.c.bf16 %v735, %v734
      %v751 = vpack.c.bf16 %v737, %v736
      %v752 = vpack.c.bf16 %v739, %v738
      %v753 = vpack.c.bf16 %v741, %v740
      %v754 = vpack.c.bf16 %v743, %v742
      %v755 = vpack.c.bf16 %v745, %v744
      %v756 = vpack.c.bf16 %v747, %v746
      %v757 = vpack.c.bf16 %v749, %v748
      %v758 = vld [vmem:[%s5] sm:$0xf]
      %v759 = vld [vmem:[%s5 + $0x4] sm:$0xf]
      %v760 = vld [vmem:[%s5 + $0x8] sm:$0xf]
      %v761 = vld [vmem:[%s5 + $0xc] sm:$0xf]
      %v762 = vlaneseq
      %v763 = vshrl.u32 %v762, 7
      %v764 = vsub.s32 0, %v763
      %v765 = vrot.slane %v337, %v764
      %v770 = vunpack.c.l.b16 %v758
      %v771 = vunpack.c.l.b16 %v759
      %v772 = vunpack.c.l.b16 %v760
      %v773 = vunpack.c.l.b16 %v761
      %v774 = vpack.c.b16 %v771, %v770
      %v775 = vpack.c.b16 %v773, %v772
      %vm778 = vcmask 261120
      %v780 = vsel %vm778, %v750, 0
      %v783 = vsel %vm778, %v751, 0
      %v786 = vsel %vm778, %v752, 0
      %v789 = vsel %vm778, %v753, 0
      %v792 = vsel %vm778, %v754, 0
      %v795 = vsel %vm778, %v755, 0
      %v798 = vsel %vm778, %v756, 0
      %v801 = vsel %vm778, %v757, 0
      %803 = vmatprep.subr.bf16.mxu0 0
      %804 = vmatpush1.bf16.msra.mxu0 %v774
      %805 = vmatprep.subr.bf16.mxu0 0
      %806 = vmatpush1.bf16.msra.mxu0 %v775
      %807 = vmatprep.subr.bf16.mxu0 0
      %808 = vmatpush1.bf16.msra.mxu0 0
      %809 = vmatprep.subr.bf16.mxu0 0
      %810 = vmatpush1.bf16.msra.mxu0 0
      %811 = vmatprep.subr.bf16.mxu0 0
      %812 = vmatpush1.bf16.msra.mxu0 0
      %813 = vmatprep.subr.bf16.mxu0 0
      %814 = vmatpush1.bf16.msra.mxu0 0
      %815 = vmatprep.subr.bf16.mxu0 0
      %816 = vmatpush1.bf16.msra.mxu0 0
      %817 = vmatprep.subr.bf16.mxu0 0
      %818 = vmatpush1.bf16.msra.mxu0 0
      %819 = vmatprep.subr.bf16.mxu0 0
      %820 = vmatpush1.bf16.msra.mxu0 0
      %821 = vmatprep.subr.bf16.mxu0 0
      %822 = vmatpush1.bf16.msra.mxu0 0
      %823 = vmatprep.subr.bf16.mxu0 0
      %824 = vmatpush1.bf16.msra.mxu0 0
      %825 = vmatprep.subr.bf16.mxu0 0
      %826 = vmatpush1.bf16.msra.mxu0 0
      %827 = vmatprep.subr.bf16.mxu0 0
      %828 = vmatpush1.bf16.msra.mxu0 0
      %829 = vmatprep.subr.bf16.mxu0 0
      %830 = vmatpush1.bf16.msra.mxu0 0
      %831 = vmatprep.subr.bf16.mxu0 0
      %832 = vmatpush1.bf16.msra.mxu0 0
      %833 = vmatprep.subr.bf16.mxu0 0
      %834 = vmatpush1.bf16.msra.mxu0 0
      %835 = vmatprep.mubr.bf16.mxu0 0
      %836 = vmatmul.mubr.bf16.gmra.mrb[0].mxu0 %v780
      %v837 = vpop.f32.mrb[0].mxu0
      %v838 = vadd.f32 %v765, %v837
      %v839 = vpop.f32.mrb[0].mxu0
      %v840 = vpop.f32.mrb[0].mxu0
      %v841 = vadd.f32 %v765, %v840
      %v842 = vpop.f32.mrb[0].mxu0
      %843 = vmatprep.mubr.bf16.mxu0 0
      %844 = vmatmul.mubr.bf16.gmra.mrb[0].mxu0 %v783
      %v845 = vpop.f32.mrb[0].mxu0
      %v846 = vadd.f32 %v765, %v845
      %v847 = vpop.f32.mrb[0].mxu0
      %v848 = vpop.f32.mrb[0].mxu0
      %v849 = vadd.f32 %v765, %v848
      %v850 = vpop.f32.mrb[0].mxu0
      %851 = vmatprep.mubr.bf16.mxu0 0
      %852 = vmatmul.mubr.bf16.gmra.mrb[0].mxu0 %v786
      %v853 = vpop.f32.mrb[0].mxu0
      %v854 = vadd.f32 %v765, %v853
      %v855 = vpop.f32.mrb[0].mxu0
      %v856 = vpop.f32.mrb[0].mxu0
      %v857 = vadd.f32 %v765, %v856
      %v858 = vpop.f32.mrb[0].mxu0
      %859 = vmatprep.mubr.bf16.mxu0 0
      %860 = vmatmul.mubr.bf16.gmra.mrb[0].mxu0 %v789
      %v861 = vpop.f32.mrb[0].mxu0
      %v862 = vadd.f32 %v765, %v861
      %v863 = vpop.f32.mrb[0].mxu0
      %v864 = vpop.f32.mrb[0].mxu0
      %v865 = vadd.f32 %v765, %v864
      %v866 = vpop.f32.mrb[0].mxu0
      %867 = vmatprep.mubr.bf16.mxu0 0
      %868 = vmatmul.mubr.bf16.gmra.mrb[0].mxu0 %v792
      %v869 = vpop.f32.mrb[0].mxu0
      %v870 = vadd.f32 %v765, %v869
      %v871 = vpop.f32.mrb[0].mxu0
      %v872 = vpop.f32.mrb[0].mxu0
      %v873 = vadd.f32 %v765, %v872
      %v874 = vpop.f32.mrb[0].mxu0
      %875 = vmatprep.mubr.bf16.mxu0 0
      %876 = vmatmul.mubr.bf16.gmra.mrb[0].mxu0 %v795
      %v877 = vpop.f32.mrb[0].mxu0
      %v878 = vadd.f32 %v765, %v877
      %v879 = vpop.f32.mrb[0].mxu0
      %v880 = vpop.f32.mrb[0].mxu0
      %v881 = vadd.f32 %v765, %v880
      %v882 = vpop.f32.mrb[0].mxu0
      %883 = vmatprep.mubr.bf16.mxu0 0
      %884 = vmatmul.mubr.bf16.gmra.mrb[0].mxu0 %v798
      %v885 = vpop.f32.mrb[0].mxu0
      %v886 = vadd.f32 %v765, %v885
      %v887 = vpop.f32.mrb[0].mxu0
      %v888 = vpop.f32.mrb[0].mxu0
      %v889 = vadd.f32 %v765, %v888
      %v890 = vpop.f32.mrb[0].mxu0
      %891 = vmatprep.mubr.bf16.mxu0 0
      %892 = vmatmul.mubr.bf16.gmra.mrb[0].mxu0 %v801
      %v893 = vpop.f32.mrb[0].mxu0
      %v894 = vadd.f32 %v765, %v893
      %v895 = vpop.f32.mrb[0].mxu0
      %v896 = vpop.f32.mrb[0].mxu0
      %v897 = vadd.f32 %v765, %v896
      %v898 = vpop.f32.mrb[0].mxu0
      %899 = vdwg.mxu0
      %v900 = vsel %vm778, %v838, 0.0
      %901 = vadd.xlane.f32.xlu0 %v900
      %v902 = vpop.xlane.xlu0 %901
      %v903 = vsel %vm778, %v841, 0.0
      %904 = vadd.xlane.f32.xlu0 %v903
      %v905 = vpop.xlane.xlu0 %904
      %v906 = vsel %vm778, %v846, 0.0
      %907 = vadd.xlane.f32.xlu0 %v906
      %v908 = vpop.xlane.xlu0 %907
      %v909 = vsel %vm778, %v849, 0.0
      %910 = vadd.xlane.f32.xlu0 %v909
      %v911 = vpop.xlane.xlu0 %910
      %v912 = vsel %vm778, %v854, 0.0
      %913 = vadd.xlane.f32.xlu0 %v912
      %v914 = vpop.xlane.xlu0 %913
      %v915 = vsel %vm778, %v857, 0.0
      %916 = vadd.xlane.f32.xlu0 %v915
      %v917 = vpop.xlane.xlu0 %916
      %v918 = vsel %vm778, %v862, 0.0
      %919 = vadd.xlane.f32.xlu0 %v918
      %v920 = vpop.xlane.xlu0 %919
      %v921 = vsel %vm778, %v865, 0.0
      %922 = vadd.xlane.f32.xlu0 %v921
      %v923 = vpop.xlane.xlu0 %922
      %v924 = vsel %vm778, %v870, 0.0
      %925 = vadd.xlane.f32.xlu0 %v924
      %v926 = vpop.xlane.xlu0 %925
      %v927 = vsel %vm778, %v873, 0.0
      %928 = vadd.xlane.f32.xlu0 %v927
      %v929 = vpop.xlane.xlu0 %928
      %v930 = vsel %vm778, %v878, 0.0
      %931 = vadd.xlane.f32.xlu0 %v930
      %v932 = vpop.xlane.xlu0 %931
      %v933 = vsel %vm778, %v881, 0.0
      %934 = vadd.xlane.f32.xlu0 %v933
      %v935 = vpop.xlane.xlu0 %934
      %v936 = vsel %vm778, %v886, 0.0
      %937 = vadd.xlane.f32.xlu0 %v936
      %v938 = vpop.xlane.xlu0 %937
      %v939 = vsel %vm778, %v889, 0.0
      %940 = vadd.xlane.f32.xlu0 %v939
      %v941 = vpop.xlane.xlu0 %940
      %v942 = vsel %vm778, %v894, 0.0
      %943 = vadd.xlane.f32.xlu0 %v942
      %v944 = vpop.xlane.xlu0 %943
      %v945 = vsel %vm778, %v897, 0.0
      %946 = vadd.xlane.f32.xlu0 %v945
      %v947 = vpop.xlane.xlu0 %946
      %v948 = vrcp.pop 32.0
      %v949 = vmul.f32 %v902, %v948
      %v950 = vmul.f32 %v905, %v948
      %v951 = vmul.f32 %v908, %v948
      %v952 = vmul.f32 %v911, %v948
      %v953 = vmul.f32 %v914, %v948
      %v954 = vmul.f32 %v917, %v948
      %v955 = vmul.f32 %v920, %v948
      %v956 = vmul.f32 %v923, %v948
      %v957 = vmul.f32 %v926, %v948
      %v958 = vmul.f32 %v929, %v948
      %v959 = vmul.f32 %v932, %v948
      %v960 = vmul.f32 %v935, %v948
      %v961 = vmul.f32 %v938, %v948
      %v962 = vmul.f32 %v941, %v948
      %v963 = vmul.f32 %v944, %v948
      %v964 = vmul.f32 %v947, %v948
      %v965 = vmul.f32 %v838, %v838
      %v966 = vmul.f32 %v841, %v841
      %v967 = vmul.f32 %v846, %v846
      %v968 = vmul.f32 %v849, %v849
      %v969 = vmul.f32 %v854, %v854
      %v970 = vmul.f32 %v857, %v857
      %v971 = vmul.f32 %v862, %v862
      %v972 = vmul.f32 %v865, %v865
      %v973 = vmul.f32 %v870, %v870
      %v974 = vmul.f32 %v873, %v873
      %v975 = vmul.f32 %v878, %v878
      %v976 = vmul.f32 %v881, %v881
      %v977 = vmul.f32 %v886, %v886
      %v978 = vmul.f32 %v889, %v889
      %v979 = vmul.f32 %v894, %v894
      %v980 = vmul.f32 %v897, %v897
      %v981 = vsel %vm778, %v965, 0.0
      %982 = vadd.xlane.f32.xlu0 %v981
      %v983 = vpop.xlane.xlu0 %982
      %v984 = vsel %vm778, %v966, 0.0
      %985 = vadd.xlane.f32.xlu0 %v984
      %v986 = vpop.xlane.xlu0 %985
      %v987 = vsel %vm778, %v967, 0.0
      %988 = vadd.xlane.f32.xlu0 %v987
      %v989 = vpop.xlane.xlu0 %988
      %v990 = vsel %vm778, %v968, 0.0
      %991 = vadd.xlane.f32.xlu0 %v990
      %v992 = vpop.xlane.xlu0 %991
      %v993 = vsel %vm778, %v969, 0.0
      %994 = vadd.xlane.f32.xlu0 %v993
      %v995 = vpop.xlane.xlu0 %994
      %v996 = vsel %vm778, %v970, 0.0
      %997 = vadd.xlane.f32.xlu0 %v996
      %v998 = vpop.xlane.xlu0 %997
      %v999 = vsel %vm778, %v971, 0.0
      %1000 = vadd.xlane.f32.xlu0 %v999
      %v1001 = vpop.xlane.xlu0 %1000
      %v1002 = vsel %vm778, %v972, 0.0
      %1003 = vadd.xlane.f32.xlu0 %v1002
      %v1004 = vpop.xlane.xlu0 %1003
      %v1005 = vsel %vm778, %v973, 0.0
      %1006 = vadd.xlane.f32.xlu0 %v1005
      %v1007 = vpop.xlane.xlu0 %1006
      %v1008 = vsel %vm778, %v974, 0.0
      %1009 = vadd.xlane.f32.xlu0 %v1008
      %v1010 = vpop.xlane.xlu0 %1009
      %v1011 = vsel %vm778, %v975, 0.0
      %1012 = vadd.xlane.f32.xlu0 %v1011
      %v1013 = vpop.xlane.xlu0 %1012
      %v1014 = vsel %vm778, %v976, 0.0
      %1015 = vadd.xlane.f32.xlu0 %v1014
      %v1016 = vpop.xlane.xlu0 %1015
      %v1017 = vsel %vm778, %v977, 0.0
      %1018 = vadd.xlane.f32.xlu0 %v1017
      %v1019 = vpop.xlane.xlu0 %1018
      %v1020 = vsel %vm778, %v978, 0.0
      %1021 = vadd.xlane.f32.xlu0 %v1020
      %v1022 = vpop.xlane.xlu0 %1021
      %v1023 = vsel %vm778, %v979, 0.0
      %1024 = vadd.xlane.f32.xlu0 %v1023
      %v1025 = vpop.xlane.xlu0 %1024
      %v1026 = vsel %vm778, %v980, 0.0
      %1027 = vadd.xlane.f32.xlu0 %v1026
      %v1028 = vpop.xlane.xlu0 %1027
      %v1029 = vmul.f32 %v983, %v948
      %v1030 = vmul.f32 %v986, %v948
      %v1031 = vmul.f32 %v989, %v948
      %v1032 = vmul.f32 %v992, %v948
      %v1033 = vmul.f32 %v995, %v948
      %v1034 = vmul.f32 %v998, %v948
      %v1035 = vmul.f32 %v1001, %v948
      %v1036 = vmul.f32 %v1004, %v948
      %v1037 = vmul.f32 %v1007, %v948
      %v1038 = vmul.f32 %v1010, %v948
      %v1039 = vmul.f32 %v1013, %v948
      %v1040 = vmul.f32 %v1016, %v948
      %v1041 = vmul.f32 %v1019, %v948
      %v1042 = vmul.f32 %v1022, %v948
      %v1043 = vmul.f32 %v1025, %v948
      %v1044 = vmul.f32 %v1028, %v948
      %v1045 = vmul.f32 %v949, %v949
      %v1046 = vmul.f32 %v950, %v950
      %v1047 = vmul.f32 %v951, %v951
      %v1048 = vmul.f32 %v952, %v952
      %v1049 = vmul.f32 %v953, %v953
      %v1050 = vmul.f32 %v954, %v954
      %v1051 = vmul.f32 %v955, %v955
      %v1052 = vmul.f32 %v956, %v956
      %v1053 = vmul.f32 %v957, %v957
      %v1054 = vmul.f32 %v958, %v958
      %v1055 = vmul.f32 %v959, %v959
      %v1056 = vmul.f32 %v960, %v960
      %v1057 = vmul.f32 %v961, %v961
      %v1058 = vmul.f32 %v962, %v962
      %v1059 = vmul.f32 %v963, %v963
      %v1060 = vmul.f32 %v964, %v964
      %v1061 = vsub.f32 %v1029, %v1045
      %v1062 = vsub.f32 %v1030, %v1046
      %v1063 = vsub.f32 %v1031, %v1047
      %v1064 = vsub.f32 %v1032, %v1048
      %v1065 = vsub.f32 %v1033, %v1049
      %v1066 = vsub.f32 %v1034, %v1050
      %v1067 = vsub.f32 %v1035, %v1051
      %v1068 = vsub.f32 %v1036, %v1052
      %v1069 = vsub.f32 %v1037, %v1053
      %v1070 = vsub.f32 %v1038, %v1054
      %v1071 = vsub.f32 %v1039, %v1055
      %v1072 = vsub.f32 %v1040, %v1056
      %v1073 = vsub.f32 %v1041, %v1057
      %v1074 = vsub.f32 %v1042, %v1058
      %v1075 = vsub.f32 %v1043, %v1059
      %v1076 = vsub.f32 %v1044, %v1060
      %v1077 = vmax.f32 %v1061, 0.0
      %v1078 = vmax.f32 %v1062, 0.0
      %v1079 = vmax.f32 %v1063, 0.0
      %v1080 = vmax.f32 %v1064, 0.0
      %v1081 = vmax.f32 %v1065, 0.0
      %v1082 = vmax.f32 %v1066, 0.0
      %v1083 = vmax.f32 %v1067, 0.0
      %v1084 = vmax.f32 %v1068, 0.0
      %v1085 = vmax.f32 %v1069, 0.0
      %v1086 = vmax.f32 %v1070, 0.0
      %v1087 = vmax.f32 %v1071, 0.0
      %v1088 = vmax.f32 %v1072, 0.0
      %v1089 = vmax.f32 %v1073, 0.0
      %v1090 = vmax.f32 %v1074, 0.0
      %v1091 = vmax.f32 %v1075, 0.0
      %v1092 = vmax.f32 %v1076, 0.0
      %v1093 = vsub.f32 %v838, %v949
      %v1094 = vsub.f32 %v841, %v950
      %v1095 = vsub.f32 %v846, %v951
      %v1096 = vsub.f32 %v849, %v952
      %v1097 = vsub.f32 %v854, %v953
      %v1098 = vsub.f32 %v857, %v954
      %v1099 = vsub.f32 %v862, %v955
      %v1100 = vsub.f32 %v865, %v956
      %v1101 = vsub.f32 %v870, %v957
      %v1102 = vsub.f32 %v873, %v958
      %v1103 = vsub.f32 %v878, %v959
      %v1104 = vsub.f32 %v881, %v960
      %v1105 = vsub.f32 %v886, %v961
      %v1106 = vsub.f32 %v889, %v962
      %v1107 = vsub.f32 %v894, %v963
      %v1108 = vsub.f32 %v897, %v964
      %v1109 = vadd.f32 %v1077, 1e-05
      %v1110 = vadd.f32 %v1078, 1e-05
      %v1111 = vadd.f32 %v1079, 1e-05
      %v1112 = vadd.f32 %v1080, 1e-05
      %v1113 = vadd.f32 %v1081, 1e-05
      %v1114 = vadd.f32 %v1082, 1e-05
      %v1115 = vadd.f32 %v1083, 1e-05
      %v1116 = vadd.f32 %v1084, 1e-05
      %v1117 = vadd.f32 %v1085, 1e-05
      %v1118 = vadd.f32 %v1086, 1e-05
      %v1119 = vadd.f32 %v1087, 1e-05
      %v1120 = vadd.f32 %v1088, 1e-05
      %v1121 = vadd.f32 %v1089, 1e-05
      %v1122 = vadd.f32 %v1090, 1e-05
      %v1123 = vadd.f32 %v1091, 1e-05
      %v1124 = vadd.f32 %v1092, 1e-05
      %v1125 = vrsqrt.pop %v1109
      %v1126 = vrsqrt.pop %v1110
      %v1127 = vrsqrt.pop %v1111
      %v1128 = vrsqrt.pop %v1112
      %v1129 = vrsqrt.pop %v1113
      %v1130 = vrsqrt.pop %v1114
      %v1131 = vrsqrt.pop %v1115
      %v1132 = vrsqrt.pop %v1116
      %v1133 = vrsqrt.pop %v1117
      %v1134 = vrsqrt.pop %v1118
      %v1135 = vrsqrt.pop %v1119
      %v1136 = vrsqrt.pop %v1120
      %v1137 = vrsqrt.pop %v1121
      %v1138 = vrsqrt.pop %v1122
      %v1139 = vrsqrt.pop %v1123
      %v1140 = vrsqrt.pop %v1124
      %v1141 = vmul.f32 %v1093, %v1125
      %v1142 = vmul.f32 %v1094, %v1126
      %v1143 = vmul.f32 %v1095, %v1127
      %v1144 = vmul.f32 %v1096, %v1128
      %v1145 = vmul.f32 %v1097, %v1129
      %v1146 = vmul.f32 %v1098, %v1130
      %v1147 = vmul.f32 %v1099, %v1131
      %v1148 = vmul.f32 %v1100, %v1132
      %v1149 = vmul.f32 %v1101, %v1133
      %v1150 = vmul.f32 %v1102, %v1134
      %v1151 = vmul.f32 %v1103, %v1135
      %v1152 = vmul.f32 %v1104, %v1136
      %v1153 = vmul.f32 %v1105, %v1137
      %v1154 = vmul.f32 %v1106, %v1138
      %v1155 = vmul.f32 %v1107, %v1139
      %v1156 = vmul.f32 %v1108, %v1140
      %v1157 = vlaneseq
      %v1158 = vshrl.u32 %v1157, 7
      %v1159 = vsub.s32 1, %v1158
      %v1160 = vrot.slane %v337, %v1159
      %v1161 = vmul.f32 %v1141, %v1160
      %v1162 = vmul.f32 %v1142, %v1160
      %v1163 = vmul.f32 %v1143, %v1160
      %v1164 = vmul.f32 %v1144, %v1160
      %v1165 = vmul.f32 %v1145, %v1160
      %v1166 = vmul.f32 %v1146, %v1160
      %v1167 = vmul.f32 %v1147, %v1160
      %v1168 = vmul.f32 %v1148, %v1160
      %v1169 = vmul.f32 %v1149, %v1160
      %v1170 = vmul.f32 %v1150, %v1160
      %v1171 = vmul.f32 %v1151, %v1160
      %v1172 = vmul.f32 %v1152, %v1160
      %v1173 = vmul.f32 %v1153, %v1160
      %v1174 = vmul.f32 %v1154, %v1160
      %v1175 = vmul.f32 %v1155, %v1160
      %v1176 = vmul.f32 %v1156, %v1160
      %v1177 = vlaneseq
      %v1178 = vshrl.u32 %v1177, 7
      %v1179 = vsub.s32 2, %v1178
      %v1180 = vrot.slane %v337, %v1179
      %v1181 = vadd.f32 %v1161, %v1180
      %v1182 = vadd.f32 %v1162, %v1180
      %v1183 = vadd.f32 %v1163, %v1180
      %v1184 = vadd.f32 %v1164, %v1180
      %v1185 = vadd.f32 %v1165, %v1180
      %v1186 = vadd.f32 %v1166, %v1180
      %v1187 = vadd.f32 %v1167, %v1180
      %v1188 = vadd.f32 %v1168, %v1180
      %v1189 = vadd.f32 %v1169, %v1180
      %v1190 = vadd.f32 %v1170, %v1180
      %v1191 = vadd.f32 %v1171, %v1180
      %v1192 = vadd.f32 %v1172, %v1180
      %v1193 = vadd.f32 %v1173, %v1180
      %v1194 = vadd.f32 %v1174, %v1180
      %v1195 = vadd.f32 %v1175, %v1180
      %v1196 = vadd.f32 %v1176, %v1180
      %v1197 = vmax.f32 %v1181, 0.0
      %v1198 = vmax.f32 %v1182, 0.0
      %v1199 = vmax.f32 %v1183, 0.0
      %v1200 = vmax.f32 %v1184, 0.0
      %v1201 = vmax.f32 %v1185, 0.0
      %v1202 = vmax.f32 %v1186, 0.0
      %v1203 = vmax.f32 %v1187, 0.0
      %v1204 = vmax.f32 %v1188, 0.0
      %v1205 = vmax.f32 %v1189, 0.0
      %v1206 = vmax.f32 %v1190, 0.0
      %v1207 = vmax.f32 %v1191, 0.0
      %v1208 = vmax.f32 %v1192, 0.0
      %v1209 = vmax.f32 %v1193, 0.0
      %v1210 = vmax.f32 %v1194, 0.0
      %v1211 = vmax.f32 %v1195, 0.0
      %v1212 = vmax.f32 %v1196, 0.0
      %v1213 = vpack.c.bf16 %v1198, %v1197
      %v1214 = vpack.c.bf16 %v1200, %v1199
      %v1215 = vpack.c.bf16 %v1202, %v1201
      %v1216 = vpack.c.bf16 %v1204, %v1203
      %v1217 = vpack.c.bf16 %v1206, %v1205
      %v1218 = vpack.c.bf16 %v1208, %v1207
      %v1219 = vpack.c.bf16 %v1210, %v1209
      %v1220 = vpack.c.bf16 %v1212, %v1211
      %s1221 = scalar_lea.vmem %s5, 16
      %v1222 = vld [vmem:[%s1221] sm:$0xf]
      %v1223 = vld [vmem:[%s1221 + $0x4] sm:$0xf]
      %v1224 = vld [vmem:[%s1221 + $0x8] sm:$0xf]
      %v1225 = vld [vmem:[%s1221 + $0xc] sm:$0xf]
      %v1226 = vlaneseq
      %v1227 = vshrl.u32 %v1226, 7
      %v1228 = vsub.s32 3, %v1227
      %v1229 = vrot.slane %v337, %v1228
      %v1234 = vunpack.c.l.b16 %v1222
      %v1235 = vunpack.c.l.b16 %v1223
      %v1236 = vunpack.c.l.b16 %v1224
      %v1237 = vunpack.c.l.b16 %v1225
      %v1238 = vpack.c.b16 %v1235, %v1234
      %v1239 = vpack.c.b16 %v1237, %v1236
      %v1243 = vsel %vm778, %v1213, 0
      %v1246 = vsel %vm778, %v1214, 0
      %v1249 = vsel %vm778, %v1215, 0
      %v1252 = vsel %vm778, %v1216, 0
      %v1255 = vsel %vm778, %v1217, 0
      %v1258 = vsel %vm778, %v1218, 0
      %v1261 = vsel %vm778, %v1219, 0
      %v1264 = vsel %vm778, %v1220, 0
      %1266 = vmatprep.subr.bf16.mxu0 0
      %1267 = vmatpush1.bf16.msra.mxu0 %v1238
      %1268 = vmatprep.subr.bf16.mxu0 0
      %1269 = vmatpush1.bf16.msra.mxu0 %v1239
      %1270 = vmatprep.subr.bf16.mxu0 0
      %1271 = vmatpush1.bf16.msra.mxu0 0
      %1272 = vmatprep.subr.bf16.mxu0 0
      %1273 = vmatpush1.bf16.msra.mxu0 0
      %1274 = vmatprep.subr.bf16.mxu0 0
      %1275 = vmatpush1.bf16.msra.mxu0 0
      %1276 = vmatprep.subr.bf16.mxu0 0
      %1277 = vmatpush1.bf16.msra.mxu0 0
      %1278 = vmatprep.subr.bf16.mxu0 0
      %1279 = vmatpush1.bf16.msra.mxu0 0
      %1280 = vmatprep.subr.bf16.mxu0 0
      %1281 = vmatpush1.bf16.msra.mxu0 0
      %1282 = vmatprep.subr.bf16.mxu0 0
      %1283 = vmatpush1.bf16.msra.mxu0 0
      %1284 = vmatprep.subr.bf16.mxu0 0
      %1285 = vmatpush1.bf16.msra.mxu0 0
      %1286 = vmatprep.subr.bf16.mxu0 0
      %1287 = vmatpush1.bf16.msra.mxu0 0
      %1288 = vmatprep.subr.bf16.mxu0 0
      %1289 = vmatpush1.bf16.msra.mxu0 0
      %1290 = vmatprep.subr.bf16.mxu0 0
      %1291 = vmatpush1.bf16.msra.mxu0 0
      %1292 = vmatprep.subr.bf16.mxu0 0
      %1293 = vmatpush1.bf16.msra.mxu0 0
      %1294 = vmatprep.subr.bf16.mxu0 0
      %1295 = vmatpush1.bf16.msra.mxu0 0
      %1296 = vmatprep.subr.bf16.mxu0 0
      %1297 = vmatpush1.bf16.msra.mxu0 0
      %1298 = vmatprep.mubr.bf16.mxu0 0
      %1299 = vmatmul.mubr.bf16.gmra.mrb[0].mxu0 %v1243
      %v1300 = vpop.f32.mrb[0].mxu0
      %v1301 = vadd.f32 %v1229, %v1300
      %v1302 = vpop.f32.mrb[0].mxu0
      %v1303 = vpop.f32.mrb[0].mxu0
      %v1304 = vadd.f32 %v1229, %v1303
      %v1305 = vpop.f32.mrb[0].mxu0
      %1306 = vmatprep.mubr.bf16.mxu0 0
      %1307 = vmatmul.mubr.bf16.gmra.mrb[0].mxu0 %v1246
      %v1308 = vpop.f32.mrb[0].mxu0
      %v1309 = vadd.f32 %v1229, %v1308
      %v1310 = vpop.f32.mrb[0].mxu0
      %v1311 = vpop.f32.mrb[0].mxu0
      %v1312 = vadd.f32 %v1229, %v1311
      %v1313 = vpop.f32.mrb[0].mxu0
      %1314 = vmatprep.mubr.bf16.mxu0 0
      %1315 = vmatmul.mubr.bf16.gmra.mrb[0].mxu0 %v1249
      %v1316 = vpop.f32.mrb[0].mxu0
      %v1317 = vadd.f32 %v1229, %v1316
      %v1318 = vpop.f32.mrb[0].mxu0
      %v1319 = vpop.f32.mrb[0].mxu0
      %v1320 = vadd.f32 %v1229, %v1319
      %v1321 = vpop.f32.mrb[0].mxu0
      %1322 = vmatprep.mubr.bf16.mxu0 0
      %1323 = vmatmul.mubr.bf16.gmra.mrb[0].mxu0 %v1252
      %v1324 = vpop.f32.mrb[0].mxu0
      %v1325 = vadd.f32 %v1229, %v1324
      %v1326 = vpop.f32.mrb[0].mxu0
      %v1327 = vpop.f32.mrb[0].mxu0
      %v1328 = vadd.f32 %v1229, %v1327
      %v1329 = vpop.f32.mrb[0].mxu0
      %1330 = vmatprep.mubr.bf16.mxu0 0
      %1331 = vmatmul.mubr.bf16.gmra.mrb[0].mxu0 %v1255
      %v1332 = vpop.f32.mrb[0].mxu0
      %v1333 = vadd.f32 %v1229, %v1332
      %v1334 = vpop.f32.mrb[0].mxu0
      %v1335 = vpop.f32.mrb[0].mxu0
      %v1336 = vadd.f32 %v1229, %v1335
      %v1337 = vpop.f32.mrb[0].mxu0
      %1338 = vmatprep.mubr.bf16.mxu0 0
      %1339 = vmatmul.mubr.bf16.gmra.mrb[0].mxu0 %v1258
      %v1340 = vpop.f32.mrb[0].mxu0
      %v1341 = vadd.f32 %v1229, %v1340
      %v1342 = vpop.f32.mrb[0].mxu0
      %v1343 = vpop.f32.mrb[0].mxu0
      %v1344 = vadd.f32 %v1229, %v1343
      %v1345 = vpop.f32.mrb[0].mxu0
      %1346 = vmatprep.mubr.bf16.mxu0 0
      %1347 = vmatmul.mubr.bf16.gmra.mrb[0].mxu0 %v1261
      %v1348 = vpop.f32.mrb[0].mxu0
      %v1349 = vadd.f32 %v1229, %v1348
      %v1350 = vpop.f32.mrb[0].mxu0
      %v1351 = vpop.f32.mrb[0].mxu0
      %v1352 = vadd.f32 %v1229, %v1351
      %v1353 = vpop.f32.mrb[0].mxu0
      %1354 = vmatprep.mubr.bf16.mxu0 0
      %1355 = vmatmul.mubr.bf16.gmra.mrb[0].mxu0 %v1264
      %v1356 = vpop.f32.mrb[0].mxu0
      %v1357 = vadd.f32 %v1229, %v1356
      %v1358 = vpop.f32.mrb[0].mxu0
      %v1359 = vpop.f32.mrb[0].mxu0
      %v1360 = vadd.f32 %v1229, %v1359
      %v1361 = vpop.f32.mrb[0].mxu0
      %1362 = vdwg.mxu0
      %v1363 = vpack.c.bf16 %v1304, %v1301
      %v1364 = vpack.c.bf16 %v1312, %v1309
      %v1365 = vpack.c.bf16 %v1320, %v1317
      %v1366 = vpack.c.bf16 %v1328, %v1325
      %v1367 = vpack.c.bf16 %v1336, %v1333
      %v1368 = vpack.c.bf16 %v1344, %v1341
      %v1369 = vpack.c.bf16 %v1352, %v1349
      %v1370 = vpack.c.bf16 %v1360, %v1357
      %s1371 = scalar_lea.vmem %s5, 32
      %v1372 = vld [vmem:[%s1371] sm:$0xf]
      %v1373 = vld [vmem:[%s1371 + $0x4] sm:$0xf]
      %v1374 = vld [vmem:[%s1371 + $0x8] sm:$0xf]
      %v1375 = vld [vmem:[%s1371 + $0xc] sm:$0xf]
      %v1376 = vlaneseq
      %v1377 = vshrl.u32 %v1376, 7
      %v1378 = vsub.s32 4, %v1377
      %v1379 = vrot.slane %v337, %v1378
      %v1384 = vunpack.c.l.b16 %v1372
      %v1385 = vunpack.c.l.b16 %v1373
      %v1386 = vunpack.c.l.b16 %v1374
      %v1387 = vunpack.c.l.b16 %v1375
      %v1388 = vpack.c.b16 %v1385, %v1384
      %v1389 = vpack.c.b16 %v1387, %v1386
      %v1393 = vsel %vm778, %v1363, 0
      %v1396 = vsel %vm778, %v1364, 0
      %v1399 = vsel %vm778, %v1365, 0
      %v1402 = vsel %vm778, %v1366, 0
      %v1405 = vsel %vm778, %v1367, 0
      %v1408 = vsel %vm778, %v1368, 0
      %v1411 = vsel %vm778, %v1369, 0
      %v1414 = vsel %vm778, %v1370, 0
      %1416 = vmatprep.subr.bf16.mxu0 0
      %1417 = vmatpush1.bf16.msra.mxu0 %v1388
      %1418 = vmatprep.subr.bf16.mxu0 0
      %1419 = vmatpush1.bf16.msra.mxu0 %v1389
      %1420 = vmatprep.subr.bf16.mxu0 0
      %1421 = vmatpush1.bf16.msra.mxu0 0
      %1422 = vmatprep.subr.bf16.mxu0 0
      %1423 = vmatpush1.bf16.msra.mxu0 0
      %1424 = vmatprep.subr.bf16.mxu0 0
      %1425 = vmatpush1.bf16.msra.mxu0 0
      %1426 = vmatprep.subr.bf16.mxu0 0
      %1427 = vmatpush1.bf16.msra.mxu0 0
      %1428 = vmatprep.subr.bf16.mxu0 0
      %1429 = vmatpush1.bf16.msra.mxu0 0
      %1430 = vmatprep.subr.bf16.mxu0 0
      %1431 = vmatpush1.bf16.msra.mxu0 0
      %1432 = vmatprep.subr.bf16.mxu0 0
      %1433 = vmatpush1.bf16.msra.mxu0 0
      %1434 = vmatprep.subr.bf16.mxu0 0
      %1435 = vmatpush1.bf16.msra.mxu0 0
      %1436 = vmatprep.subr.bf16.mxu0 0
      %1437 = vmatpush1.bf16.msra.mxu0 0
      %1438 = vmatprep.subr.bf16.mxu0 0
      %1439 = vmatpush1.bf16.msra.mxu0 0
      %1440 = vmatprep.subr.bf16.mxu0 0
      %1441 = vmatpush1.bf16.msra.mxu0 0
      %1442 = vmatprep.subr.bf16.mxu0 0
      %1443 = vmatpush1.bf16.msra.mxu0 0
      %1444 = vmatprep.subr.bf16.mxu0 0
      %1445 = vmatpush1.bf16.msra.mxu0 0
      %1446 = vmatprep.subr.bf16.mxu0 0
      %1447 = vmatpush1.bf16.msra.mxu0 0
      %1448 = vmatprep.mubr.bf16.mxu0 0
      %1449 = vmatmul.mubr.bf16.gmra.mrb[0].mxu0 %v1393
      %v1450 = vpop.f32.mrb[0].mxu0
      %v1451 = vadd.f32 %v1379, %v1450
      %v1452 = vpop.f32.mrb[0].mxu0
      %v1453 = vpop.f32.mrb[0].mxu0
      %v1454 = vadd.f32 %v1379, %v1453
      %v1455 = vpop.f32.mrb[0].mxu0
      %1456 = vmatprep.mubr.bf16.mxu0 0
      %1457 = vmatmul.mubr.bf16.gmra.mrb[0].mxu0 %v1396
      %v1458 = vpop.f32.mrb[0].mxu0
      %v1459 = vadd.f32 %v1379, %v1458
      %v1460 = vpop.f32.mrb[0].mxu0
      %v1461 = vpop.f32.mrb[0].mxu0
      %v1462 = vadd.f32 %v1379, %v1461
      %v1463 = vpop.f32.mrb[0].mxu0
      %1464 = vmatprep.mubr.bf16.mxu0 0
      %1465 = vmatmul.mubr.bf16.gmra.mrb[0].mxu0 %v1399
      %v1466 = vpop.f32.mrb[0].mxu0
      %v1467 = vadd.f32 %v1379, %v1466
      %v1468 = vpop.f32.mrb[0].mxu0
      %v1469 = vpop.f32.mrb[0].mxu0
      %v1470 = vadd.f32 %v1379, %v1469
      %v1471 = vpop.f32.mrb[0].mxu0
      %1472 = vmatprep.mubr.bf16.mxu0 0
      %1473 = vmatmul.mubr.bf16.gmra.mrb[0].mxu0 %v1402
      %v1474 = vpop.f32.mrb[0].mxu0
      %v1475 = vadd.f32 %v1379, %v1474
      %v1476 = vpop.f32.mrb[0].mxu0
      %v1477 = vpop.f32.mrb[0].mxu0
      %v1478 = vadd.f32 %v1379, %v1477
      %v1479 = vpop.f32.mrb[0].mxu0
      %1480 = vmatprep.mubr.bf16.mxu0 0
      %1481 = vmatmul.mubr.bf16.gmra.mrb[0].mxu0 %v1405
      %v1482 = vpop.f32.mrb[0].mxu0
      %v1483 = vadd.f32 %v1379, %v1482
      %v1484 = vpop.f32.mrb[0].mxu0
      %v1485 = vpop.f32.mrb[0].mxu0
      %v1486 = vadd.f32 %v1379, %v1485
      %v1487 = vpop.f32.mrb[0].mxu0
      %1488 = vmatprep.mubr.bf16.mxu0 0
      %1489 = vmatmul.mubr.bf16.gmra.mrb[0].mxu0 %v1408
      %v1490 = vpop.f32.mrb[0].mxu0
      %v1491 = vadd.f32 %v1379, %v1490
      %v1492 = vpop.f32.mrb[0].mxu0
      %v1493 = vpop.f32.mrb[0].mxu0
      %v1494 = vadd.f32 %v1379, %v1493
      %v1495 = vpop.f32.mrb[0].mxu0
      %1496 = vmatprep.mubr.bf16.mxu0 0
      %1497 = vmatmul.mubr.bf16.gmra.mrb[0].mxu0 %v1411
      %v1498 = vpop.f32.mrb[0].mxu0
      %v1499 = vadd.f32 %v1379, %v1498
      %v1500 = vpop.f32.mrb[0].mxu0
      %v1501 = vpop.f32.mrb[0].mxu0
      %v1502 = vadd.f32 %v1379, %v1501
      %v1503 = vpop.f32.mrb[0].mxu0
      %1504 = vmatprep.mubr.bf16.mxu0 0
      %1505 = vmatmul.mubr.bf16.gmra.mrb[0].mxu0 %v1414
      %v1506 = vpop.f32.mrb[0].mxu0
      %v1507 = vadd.f32 %v1379, %v1506
      %v1508 = vpop.f32.mrb[0].mxu0
      %v1509 = vpop.f32.mrb[0].mxu0
      %v1510 = vadd.f32 %v1379, %v1509
      %v1511 = vpop.f32.mrb[0].mxu0
      %1512 = vdwg.mxu0
      %v1513 = vmax.f32 %v1451, 0.0
      %v1514 = vmax.f32 %v1454, 0.0
      %v1515 = vmax.f32 %v1459, 0.0
      %v1516 = vmax.f32 %v1462, 0.0
      %v1517 = vmax.f32 %v1467, 0.0
      %v1518 = vmax.f32 %v1470, 0.0
      %v1519 = vmax.f32 %v1475, 0.0
      %v1520 = vmax.f32 %v1478, 0.0
      %v1521 = vmax.f32 %v1483, 0.0
      %v1522 = vmax.f32 %v1486, 0.0
      %v1523 = vmax.f32 %v1491, 0.0
      %v1524 = vmax.f32 %v1494, 0.0
      %v1525 = vmax.f32 %v1499, 0.0
      %v1526 = vmax.f32 %v1502, 0.0
      %v1527 = vmax.f32 %v1507, 0.0
      %v1528 = vmax.f32 %v1510, 0.0
      %v1529 = vpack.c.bf16 %v1514, %v1513
      %v1530 = vpack.c.bf16 %v1516, %v1515
      %v1531 = vpack.c.bf16 %v1518, %v1517
      %v1532 = vpack.c.bf16 %v1520, %v1519
      %v1533 = vpack.c.bf16 %v1522, %v1521
      %v1534 = vpack.c.bf16 %v1524, %v1523
      %v1535 = vpack.c.bf16 %v1526, %v1525
      %v1536 = vpack.c.bf16 %v1528, %v1527
      %s1537 = scalar_lea.vmem %s5, 48
      %v1538 = vld [vmem:[%s1537] sm:$0xf]
      %v1539 = vld [vmem:[%s1537 + $0x4] sm:$0xf]
      %v1540 = vld [vmem:[%s1537 + $0x8] sm:$0xf]
      %v1541 = vld [vmem:[%s1537 + $0xc] sm:$0xf]
      %v1542 = vlaneseq
      %v1543 = vshrl.u32 %v1542, 7
      %v1544 = vsub.s32 5, %v1543
      %v1545 = vrot.slane %v337, %v1544
      %v1550 = vunpack.c.l.b16 %v1538
      %v1551 = vunpack.c.l.b16 %v1539
      %v1552 = vunpack.c.l.b16 %v1540
      %v1553 = vunpack.c.l.b16 %v1541
      %v1554 = vpack.c.b16 %v1551, %v1550
      %v1555 = vpack.c.b16 %v1553, %v1552
      %v1559 = vsel %vm778, %v1529, 0
      %v1562 = vsel %vm778, %v1530, 0
      %v1565 = vsel %vm778, %v1531, 0
      %v1568 = vsel %vm778, %v1532, 0
      %v1571 = vsel %vm778, %v1533, 0
      %v1574 = vsel %vm778, %v1534, 0
      %v1577 = vsel %vm778, %v1535, 0
      %v1580 = vsel %vm778, %v1536, 0
      %1582 = vmatprep.subr.bf16.mxu0 0
      %1583 = vmatpush1.bf16.msra.mxu0 %v1554
      %1584 = vmatprep.subr.bf16.mxu0 0
      %1585 = vmatpush1.bf16.msra.mxu0 %v1555
      %1586 = vmatprep.subr.bf16.mxu0 0
      %1587 = vmatpush1.bf16.msra.mxu0 0
      %1588 = vmatprep.subr.bf16.mxu0 0
      %1589 = vmatpush1.bf16.msra.mxu0 0
      %1590 = vmatprep.subr.bf16.mxu0 0
      %1591 = vmatpush1.bf16.msra.mxu0 0
      %1592 = vmatprep.subr.bf16.mxu0 0
      %1593 = vmatpush1.bf16.msra.mxu0 0
      %1594 = vmatprep.subr.bf16.mxu0 0
      %1595 = vmatpush1.bf16.msra.mxu0 0
      %1596 = vmatprep.subr.bf16.mxu0 0
      %1597 = vmatpush1.bf16.msra.mxu0 0
      %1598 = vmatprep.subr.bf16.mxu0 0
      %1599 = vmatpush1.bf16.msra.mxu0 0
      %1600 = vmatprep.subr.bf16.mxu0 0
      %1601 = vmatpush1.bf16.msra.mxu0 0
      %1602 = vmatprep.subr.bf16.mxu0 0
      %1603 = vmatpush1.bf16.msra.mxu0 0
      %1604 = vmatprep.subr.bf16.mxu0 0
      %1605 = vmatpush1.bf16.msra.mxu0 0
      %1606 = vmatprep.subr.bf16.mxu0 0
      %1607 = vmatpush1.bf16.msra.mxu0 0
      %1608 = vmatprep.subr.bf16.mxu0 0
      %1609 = vmatpush1.bf16.msra.mxu0 0
      %1610 = vmatprep.subr.bf16.mxu0 0
      %1611 = vmatpush1.bf16.msra.mxu0 0
      %1612 = vmatprep.subr.bf16.mxu0 0
      %1613 = vmatpush1.bf16.msra.mxu0 0
      %1614 = vmatprep.mubr.bf16.mxu0 0
      %1615 = vmatmul.mubr.bf16.gmra.mrb[0].mxu0 %v1559
      %v1616 = vpop.f32.mrb[0].mxu0
      %v1617 = vadd.f32 %v1545, %v1616
      %v1618 = vpop.f32.mrb[0].mxu0
      %v1619 = vpop.f32.mrb[0].mxu0
      %v1620 = vadd.f32 %v1545, %v1619
      %v1621 = vpop.f32.mrb[0].mxu0
      %1622 = vmatprep.mubr.bf16.mxu0 0
      %1623 = vmatmul.mubr.bf16.gmra.mrb[0].mxu0 %v1562
      %v1624 = vpop.f32.mrb[0].mxu0
      %v1625 = vadd.f32 %v1545, %v1624
      %v1626 = vpop.f32.mrb[0].mxu0
      %v1627 = vpop.f32.mrb[0].mxu0
      %v1628 = vadd.f32 %v1545, %v1627
      %v1629 = vpop.f32.mrb[0].mxu0
      %1630 = vmatprep.mubr.bf16.mxu0 0
      %1631 = vmatmul.mubr.bf16.gmra.mrb[0].mxu0 %v1565
      %v1632 = vpop.f32.mrb[0].mxu0
      %v1633 = vadd.f32 %v1545, %v1632
      %v1634 = vpop.f32.mrb[0].mxu0
      %v1635 = vpop.f32.mrb[0].mxu0
      %v1636 = vadd.f32 %v1545, %v1635
      %v1637 = vpop.f32.mrb[0].mxu0
      %1638 = vmatprep.mubr.bf16.mxu0 0
      %1639 = vmatmul.mubr.bf16.gmra.mrb[0].mxu0 %v1568
      %v1640 = vpop.f32.mrb[0].mxu0
      %v1641 = vadd.f32 %v1545, %v1640
      %v1642 = vpop.f32.mrb[0].mxu0
      %v1643 = vpop.f32.mrb[0].mxu0
      %v1644 = vadd.f32 %v1545, %v1643
      %v1645 = vpop.f32.mrb[0].mxu0
      %1646 = vmatprep.mubr.bf16.mxu0 0
      %1647 = vmatmul.mubr.bf16.gmra.mrb[0].mxu0 %v1571
      %v1648 = vpop.f32.mrb[0].mxu0
      %v1649 = vadd.f32 %v1545, %v1648
      %v1650 = vpop.f32.mrb[0].mxu0
      %v1651 = vpop.f32.mrb[0].mxu0
      %v1652 = vadd.f32 %v1545, %v1651
      %v1653 = vpop.f32.mrb[0].mxu0
      %1654 = vmatprep.mubr.bf16.mxu0 0
      %1655 = vmatmul.mubr.bf16.gmra.mrb[0].mxu0 %v1574
      %v1656 = vpop.f32.mrb[0].mxu0
      %v1657 = vadd.f32 %v1545, %v1656
      %v1658 = vpop.f32.mrb[0].mxu0
      %v1659 = vpop.f32.mrb[0].mxu0
      %v1660 = vadd.f32 %v1545, %v1659
      %v1661 = vpop.f32.mrb[0].mxu0
      %1662 = vmatprep.mubr.bf16.mxu0 0
      %1663 = vmatmul.mubr.bf16.gmra.mrb[0].mxu0 %v1577
      %v1664 = vpop.f32.mrb[0].mxu0
      %v1665 = vadd.f32 %v1545, %v1664
      %v1666 = vpop.f32.mrb[0].mxu0
      %v1667 = vpop.f32.mrb[0].mxu0
      %v1668 = vadd.f32 %v1545, %v1667
      %v1669 = vpop.f32.mrb[0].mxu0
      %1670 = vmatprep.mubr.bf16.mxu0 0
      %1671 = vmatmul.mubr.bf16.gmra.mrb[0].mxu0 %v1580
      %v1672 = vpop.f32.mrb[0].mxu0
      %v1673 = vadd.f32 %v1545, %v1672
      %v1674 = vpop.f32.mrb[0].mxu0
      %v1675 = vpop.f32.mrb[0].mxu0
      %v1676 = vadd.f32 %v1545, %v1675
      %v1677 = vpop.f32.mrb[0].mxu0
      %1678 = vdwg.mxu0
      %v1679 = vsel %vm778, %v1617, 0.0
      %1680 = vadd.xlane.f32.xlu0 %v1679
      %v1681 = vpop.xlane.xlu0 %1680
      %v1682 = vsel %vm778, %v1620, 0.0
      %1683 = vadd.xlane.f32.xlu0 %v1682
      %v1684 = vpop.xlane.xlu0 %1683
      %v1685 = vsel %vm778, %v1625, 0.0
      %1686 = vadd.xlane.f32.xlu0 %v1685
      %v1687 = vpop.xlane.xlu0 %1686
      %v1688 = vsel %vm778, %v1628, 0.0
      %1689 = vadd.xlane.f32.xlu0 %v1688
      %v1690 = vpop.xlane.xlu0 %1689
      %v1691 = vsel %vm778, %v1633, 0.0
      %1692 = vadd.xlane.f32.xlu0 %v1691
      %v1693 = vpop.xlane.xlu0 %1692
      %v1694 = vsel %vm778, %v1636, 0.0
      %1695 = vadd.xlane.f32.xlu0 %v1694
      %v1696 = vpop.xlane.xlu0 %1695
      %v1697 = vsel %vm778, %v1641, 0.0
      %1698 = vadd.xlane.f32.xlu0 %v1697
      %v1699 = vpop.xlane.xlu0 %1698
      %v1700 = vsel %vm778, %v1644, 0.0
      %1701 = vadd.xlane.f32.xlu0 %v1700
      %v1702 = vpop.xlane.xlu0 %1701
      %v1703 = vsel %vm778, %v1649, 0.0
      %1704 = vadd.xlane.f32.xlu0 %v1703
      %v1705 = vpop.xlane.xlu0 %1704
      %v1706 = vsel %vm778, %v1652, 0.0
      %1707 = vadd.xlane.f32.xlu0 %v1706
      %v1708 = vpop.xlane.xlu0 %1707
      %v1709 = vsel %vm778, %v1657, 0.0
      %1710 = vadd.xlane.f32.xlu0 %v1709
      %v1711 = vpop.xlane.xlu0 %1710
      %v1712 = vsel %vm778, %v1660, 0.0
      %1713 = vadd.xlane.f32.xlu0 %v1712
      %v1714 = vpop.xlane.xlu0 %1713
      %v1715 = vsel %vm778, %v1665, 0.0
      %1716 = vadd.xlane.f32.xlu0 %v1715
      %v1717 = vpop.xlane.xlu0 %1716
      %v1718 = vsel %vm778, %v1668, 0.0
      %1719 = vadd.xlane.f32.xlu0 %v1718
      %v1720 = vpop.xlane.xlu0 %1719
      %v1721 = vsel %vm778, %v1673, 0.0
      %1722 = vadd.xlane.f32.xlu0 %v1721
      %v1723 = vpop.xlane.xlu0 %1722
      %v1724 = vsel %vm778, %v1676, 0.0
      %1725 = vadd.xlane.f32.xlu0 %v1724
      %v1726 = vpop.xlane.xlu0 %1725
      %v1727 = vmul.f32 %v1681, %v948
      %v1728 = vmul.f32 %v1684, %v948
      %v1729 = vmul.f32 %v1687, %v948
      %v1730 = vmul.f32 %v1690, %v948
      %v1731 = vmul.f32 %v1693, %v948
      %v1732 = vmul.f32 %v1696, %v948
      %v1733 = vmul.f32 %v1699, %v948
      %v1734 = vmul.f32 %v1702, %v948
      %v1735 = vmul.f32 %v1705, %v948
      %v1736 = vmul.f32 %v1708, %v948
      %v1737 = vmul.f32 %v1711, %v948
      %v1738 = vmul.f32 %v1714, %v948
      %v1739 = vmul.f32 %v1717, %v948
      %v1740 = vmul.f32 %v1720, %v948
      %v1741 = vmul.f32 %v1723, %v948
      %v1742 = vmul.f32 %v1726, %v948
      %v1743 = vmul.f32 %v1617, %v1617
      %v1744 = vmul.f32 %v1620, %v1620
      %v1745 = vmul.f32 %v1625, %v1625
      %v1746 = vmul.f32 %v1628, %v1628
      %v1747 = vmul.f32 %v1633, %v1633
      %v1748 = vmul.f32 %v1636, %v1636
      %v1749 = vmul.f32 %v1641, %v1641
      %v1750 = vmul.f32 %v1644, %v1644
      %v1751 = vmul.f32 %v1649, %v1649
      %v1752 = vmul.f32 %v1652, %v1652
      %v1753 = vmul.f32 %v1657, %v1657
      %v1754 = vmul.f32 %v1660, %v1660
      %v1755 = vmul.f32 %v1665, %v1665
      %v1756 = vmul.f32 %v1668, %v1668
      %v1757 = vmul.f32 %v1673, %v1673
      %v1758 = vmul.f32 %v1676, %v1676
      %v1759 = vsel %vm778, %v1743, 0.0
      %1760 = vadd.xlane.f32.xlu0 %v1759
      %v1761 = vpop.xlane.xlu0 %1760
      %v1762 = vsel %vm778, %v1744, 0.0
      %1763 = vadd.xlane.f32.xlu0 %v1762
      %v1764 = vpop.xlane.xlu0 %1763
      %v1765 = vsel %vm778, %v1745, 0.0
      %1766 = vadd.xlane.f32.xlu0 %v1765
      %v1767 = vpop.xlane.xlu0 %1766
      %v1768 = vsel %vm778, %v1746, 0.0
      %1769 = vadd.xlane.f32.xlu0 %v1768
      %v1770 = vpop.xlane.xlu0 %1769
      %v1771 = vsel %vm778, %v1747, 0.0
      %1772 = vadd.xlane.f32.xlu0 %v1771
      %v1773 = vpop.xlane.xlu0 %1772
      %v1774 = vsel %vm778, %v1748, 0.0
      %1775 = vadd.xlane.f32.xlu0 %v1774
      %v1776 = vpop.xlane.xlu0 %1775
      %v1777 = vsel %vm778, %v1749, 0.0
      %1778 = vadd.xlane.f32.xlu0 %v1777
      %v1779 = vpop.xlane.xlu0 %1778
      %v1780 = vsel %vm778, %v1750, 0.0
      %1781 = vadd.xlane.f32.xlu0 %v1780
      %v1782 = vpop.xlane.xlu0 %1781
      %v1783 = vsel %vm778, %v1751, 0.0
      %1784 = vadd.xlane.f32.xlu0 %v1783
      %v1785 = vpop.xlane.xlu0 %1784
      %v1786 = vsel %vm778, %v1752, 0.0
      %1787 = vadd.xlane.f32.xlu0 %v1786
      %v1788 = vpop.xlane.xlu0 %1787
      %v1789 = vsel %vm778, %v1753, 0.0
      %1790 = vadd.xlane.f32.xlu0 %v1789
      %v1791 = vpop.xlane.xlu0 %1790
      %v1792 = vsel %vm778, %v1754, 0.0
      %1793 = vadd.xlane.f32.xlu0 %v1792
      %v1794 = vpop.xlane.xlu0 %1793
      %v1795 = vsel %vm778, %v1755, 0.0
      %1796 = vadd.xlane.f32.xlu0 %v1795
      %v1797 = vpop.xlane.xlu0 %1796
      %v1798 = vsel %vm778, %v1756, 0.0
      %1799 = vadd.xlane.f32.xlu0 %v1798
      %v1800 = vpop.xlane.xlu0 %1799
      %v1801 = vsel %vm778, %v1757, 0.0
      %1802 = vadd.xlane.f32.xlu0 %v1801
      %v1803 = vpop.xlane.xlu0 %1802
      %v1804 = vsel %vm778, %v1758, 0.0
      %1805 = vadd.xlane.f32.xlu0 %v1804
      %v1806 = vpop.xlane.xlu0 %1805
      %v1807 = vmul.f32 %v1761, %v948
      %v1808 = vmul.f32 %v1764, %v948
      %v1809 = vmul.f32 %v1767, %v948
      %v1810 = vmul.f32 %v1770, %v948
      %v1811 = vmul.f32 %v1773, %v948
      %v1812 = vmul.f32 %v1776, %v948
      %v1813 = vmul.f32 %v1779, %v948
      %v1814 = vmul.f32 %v1782, %v948
      %v1815 = vmul.f32 %v1785, %v948
      %v1816 = vmul.f32 %v1788, %v948
      %v1817 = vmul.f32 %v1791, %v948
      %v1818 = vmul.f32 %v1794, %v948
      %v1819 = vmul.f32 %v1797, %v948
      %v1820 = vmul.f32 %v1800, %v948
      %v1821 = vmul.f32 %v1803, %v948
      %v1822 = vmul.f32 %v1806, %v948
      %v1823 = vmul.f32 %v1727, %v1727
      %v1824 = vmul.f32 %v1728, %v1728
      %v1825 = vmul.f32 %v1729, %v1729
      %v1826 = vmul.f32 %v1730, %v1730
      %v1827 = vmul.f32 %v1731, %v1731
      %v1828 = vmul.f32 %v1732, %v1732
      %v1829 = vmul.f32 %v1733, %v1733
      %v1830 = vmul.f32 %v1734, %v1734
      %v1831 = vmul.f32 %v1735, %v1735
      %v1832 = vmul.f32 %v1736, %v1736
      %v1833 = vmul.f32 %v1737, %v1737
      %v1834 = vmul.f32 %v1738, %v1738
      %v1835 = vmul.f32 %v1739, %v1739
      %v1836 = vmul.f32 %v1740, %v1740
      %v1837 = vmul.f32 %v1741, %v1741
      %v1838 = vmul.f32 %v1742, %v1742
      %v1839 = vsub.f32 %v1807, %v1823
      %v1840 = vsub.f32 %v1808, %v1824
      %v1841 = vsub.f32 %v1809, %v1825
      %v1842 = vsub.f32 %v1810, %v1826
      %v1843 = vsub.f32 %v1811, %v1827
      %v1844 = vsub.f32 %v1812, %v1828
      %v1845 = vsub.f32 %v1813, %v1829
      %v1846 = vsub.f32 %v1814, %v1830
      %v1847 = vsub.f32 %v1815, %v1831
      %v1848 = vsub.f32 %v1816, %v1832
      %v1849 = vsub.f32 %v1817, %v1833
      %v1850 = vsub.f32 %v1818, %v1834
      %v1851 = vsub.f32 %v1819, %v1835
      %v1852 = vsub.f32 %v1820, %v1836
      %v1853 = vsub.f32 %v1821, %v1837
      %v1854 = vsub.f32 %v1822, %v1838
      %v1855 = vmax.f32 %v1839, 0.0
      %v1856 = vmax.f32 %v1840, 0.0
      %v1857 = vmax.f32 %v1841, 0.0
      %v1858 = vmax.f32 %v1842, 0.0
      %v1859 = vmax.f32 %v1843, 0.0
      %v1860 = vmax.f32 %v1844, 0.0
      %v1861 = vmax.f32 %v1845, 0.0
      %v1862 = vmax.f32 %v1846, 0.0
      %v1863 = vmax.f32 %v1847, 0.0
      %v1864 = vmax.f32 %v1848, 0.0
      %v1865 = vmax.f32 %v1849, 0.0
      %v1866 = vmax.f32 %v1850, 0.0
      %v1867 = vmax.f32 %v1851, 0.0
      %v1868 = vmax.f32 %v1852, 0.0
      %v1869 = vmax.f32 %v1853, 0.0
      %v1870 = vmax.f32 %v1854, 0.0
      %v1871 = vsub.f32 %v1617, %v1727
      %v1872 = vsub.f32 %v1620, %v1728
      %v1873 = vsub.f32 %v1625, %v1729
      %v1874 = vsub.f32 %v1628, %v1730
      %v1875 = vsub.f32 %v1633, %v1731
      %v1876 = vsub.f32 %v1636, %v1732
      %v1877 = vsub.f32 %v1641, %v1733
      %v1878 = vsub.f32 %v1644, %v1734
      %v1879 = vsub.f32 %v1649, %v1735
      %v1880 = vsub.f32 %v1652, %v1736
      %v1881 = vsub.f32 %v1657, %v1737
      %v1882 = vsub.f32 %v1660, %v1738
      %v1883 = vsub.f32 %v1665, %v1739
      %v1884 = vsub.f32 %v1668, %v1740
      %v1885 = vsub.f32 %v1673, %v1741
      %v1886 = vsub.f32 %v1676, %v1742
      %v1887 = vadd.f32 %v1855, 1e-05
      %v1888 = vadd.f32 %v1856, 1e-05
      %v1889 = vadd.f32 %v1857, 1e-05
      %v1890 = vadd.f32 %v1858, 1e-05
      %v1891 = vadd.f32 %v1859, 1e-05
      %v1892 = vadd.f32 %v1860, 1e-05
      %v1893 = vadd.f32 %v1861, 1e-05
      %v1894 = vadd.f32 %v1862, 1e-05
      %v1895 = vadd.f32 %v1863, 1e-05
      %v1896 = vadd.f32 %v1864, 1e-05
      %v1897 = vadd.f32 %v1865, 1e-05
      %v1898 = vadd.f32 %v1866, 1e-05
      %v1899 = vadd.f32 %v1867, 1e-05
      %v1900 = vadd.f32 %v1868, 1e-05
      %v1901 = vadd.f32 %v1869, 1e-05
      %v1902 = vadd.f32 %v1870, 1e-05
      %v1903 = vrsqrt.pop %v1887
      %v1904 = vrsqrt.pop %v1888
      %v1905 = vrsqrt.pop %v1889
      %v1906 = vrsqrt.pop %v1890
      %v1907 = vrsqrt.pop %v1891
      %v1908 = vrsqrt.pop %v1892
      %v1909 = vrsqrt.pop %v1893
      %v1910 = vrsqrt.pop %v1894
      %v1911 = vrsqrt.pop %v1895
      %v1912 = vrsqrt.pop %v1896
      %v1913 = vrsqrt.pop %v1897
      %v1914 = vrsqrt.pop %v1898
      %v1915 = vrsqrt.pop %v1899
      %v1916 = vrsqrt.pop %v1900
      %v1917 = vrsqrt.pop %v1901
      %v1918 = vrsqrt.pop %v1902
      %v1919 = vmul.f32 %v1871, %v1903
      %v1920 = vmul.f32 %v1872, %v1904
      %v1921 = vmul.f32 %v1873, %v1905
      %v1922 = vmul.f32 %v1874, %v1906
      %v1923 = vmul.f32 %v1875, %v1907
      %v1924 = vmul.f32 %v1876, %v1908
      %v1925 = vmul.f32 %v1877, %v1909
      %v1926 = vmul.f32 %v1878, %v1910
      %v1927 = vmul.f32 %v1879, %v1911
      %v1928 = vmul.f32 %v1880, %v1912
      %v1929 = vmul.f32 %v1881, %v1913
      %v1930 = vmul.f32 %v1882, %v1914
      %v1931 = vmul.f32 %v1883, %v1915
      %v1932 = vmul.f32 %v1884, %v1916
      %v1933 = vmul.f32 %v1885, %v1917
      %v1934 = vmul.f32 %v1886, %v1918
      %v1935 = vlaneseq
      %v1936 = vshrl.u32 %v1935, 7
      %v1937 = vsub.s32 6, %v1936
      %v1938 = vrot.slane %v337, %v1937
      %v1939 = vmul.f32 %v1919, %v1938
      %v1940 = vmul.f32 %v1920, %v1938
      %v1941 = vmul.f32 %v1921, %v1938
      %v1942 = vmul.f32 %v1922, %v1938
      %v1943 = vmul.f32 %v1923, %v1938
      %v1944 = vmul.f32 %v1924, %v1938
      %v1945 = vmul.f32 %v1925, %v1938
      %v1946 = vmul.f32 %v1926, %v1938
      %v1947 = vmul.f32 %v1927, %v1938
      %v1948 = vmul.f32 %v1928, %v1938
      %v1949 = vmul.f32 %v1929, %v1938
      %v1950 = vmul.f32 %v1930, %v1938
      %v1951 = vmul.f32 %v1931, %v1938
      %v1952 = vmul.f32 %v1932, %v1938
      %v1953 = vmul.f32 %v1933, %v1938
      %v1954 = vmul.f32 %v1934, %v1938
      %v1955 = vlaneseq
      %v1956 = vshrl.u32 %v1955, 7
      %v1957 = vsub.s32 7, %v1956
      %v1958 = vrot.slane %v337, %v1957
      %v1959 = vadd.f32 %v1939, %v1958
      %v1960 = vadd.f32 %v1940, %v1958
      %v1961 = vadd.f32 %v1941, %v1958
      %v1962 = vadd.f32 %v1942, %v1958
      %v1963 = vadd.f32 %v1943, %v1958
      %v1964 = vadd.f32 %v1944, %v1958
      %v1965 = vadd.f32 %v1945, %v1958
      %v1966 = vadd.f32 %v1946, %v1958
      %v1967 = vadd.f32 %v1947, %v1958
      %v1968 = vadd.f32 %v1948, %v1958
      %v1969 = vadd.f32 %v1949, %v1958
      %v1970 = vadd.f32 %v1950, %v1958
      %v1971 = vadd.f32 %v1951, %v1958
      %v1972 = vadd.f32 %v1952, %v1958
      %v1973 = vadd.f32 %v1953, %v1958
      %v1974 = vadd.f32 %v1954, %v1958
      %v1975 = vpack.c.bf16 %v1960, %v1959
      %v1976 = vpack.c.bf16 %v1962, %v1961
      %v1977 = vpack.c.bf16 %v1964, %v1963
      %v1978 = vpack.c.bf16 %v1966, %v1965
      %v1979 = vpack.c.bf16 %v1968, %v1967
      %v1980 = vpack.c.bf16 %v1970, %v1969
      %v1981 = vpack.c.bf16 %v1972, %v1971
      %v1982 = vpack.c.bf16 %v1974, %v1973
      %v1983 = vpack.c.bf16 %v336, %v335
      %1984 = vmatprep.subr.bf16.mxu0 0
      %1985 = vmatpush1.bf16.msra.mxu0 %v1975
      %1986 = vmatprep.subr.bf16.mxu0 0
      %1987 = vmatpush1.bf16.msra.mxu0 %v1976
      %1988 = vmatprep.subr.bf16.mxu0 0
      %1989 = vmatpush1.bf16.msra.mxu0 %v1977
      %1990 = vmatprep.subr.bf16.mxu0 0
      %1991 = vmatpush1.bf16.msra.mxu0 %v1978
      %1992 = vmatprep.subr.bf16.mxu0 0
      %1993 = vmatpush1.bf16.msra.mxu0 %v1979
      %1994 = vmatprep.subr.bf16.mxu0 0
      %1995 = vmatpush1.bf16.msra.mxu0 %v1980
      %1996 = vmatprep.subr.bf16.mxu0 0
      %1997 = vmatpush1.bf16.msra.mxu0 %v1981
      %1998 = vmatprep.subr.bf16.mxu0 0
      %1999 = vmatpush1.bf16.msra.mxu0 %v1982
      %2000 = vmatprep.subr.bf16.mxu0 0
      %2001 = vmatpush1.bf16.msra.mxu0 0
      %2002 = vmatprep.subr.bf16.mxu0 0
      %2003 = vmatpush1.bf16.msra.mxu0 0
      %2004 = vmatprep.subr.bf16.mxu0 0
      %2005 = vmatpush1.bf16.msra.mxu0 0
      %2006 = vmatprep.subr.bf16.mxu0 0
      %2007 = vmatpush1.bf16.msra.mxu0 0
      %2008 = vmatprep.subr.bf16.mxu0 0
      %2009 = vmatpush1.bf16.msra.mxu0 0
      %2010 = vmatprep.subr.bf16.mxu0 0
      %2011 = vmatpush1.bf16.msra.mxu0 0
      %2012 = vmatprep.subr.bf16.mxu0 0
      %2013 = vmatpush1.bf16.msra.mxu0 0
      %2014 = vmatprep.subr.bf16.mxu0 0
      %2015 = vmatpush1.bf16.msra.mxu0 0
      %2016 = vmatprep.mubr.bf16.mxu0 0
      %2017 = vmatmul.mubr.bf16.gmra.mrb[0].mxu0 %v1983
      %v2018 = vpop.f32.mrb[0].mxu0
      %v2019 = vadd.f32 0.0, %v2018
      %v2020 = vpop.f32.mrb[0].mxu0
      %v2021 = vpop.f32.mrb[0].mxu0
      %v2022 = vadd.f32 0.0, %v2021
      %v2023 = vpop.f32.mrb[0].mxu0
      %2024 = vdwg.mxu0
      %v2025 = vmul.f32 %v2019, 0.125
      %v2026 = vmul.f32 %v2022, 0.125
      %v2027 = vpack.c.bf16 %v2026, %v2025
      %s2028 = scalar_lea.vmem %s5, 64
      %v2029 = vld [vmem:[%s2028] sm:$0xf]
      %v2030 = vld [vmem:[%s2028 + $0x4] sm:$0xf]
      %v2031 = vld [vmem:[%s2028 + $0x8] sm:$0xf]
      %v2032 = vld [vmem:[%s2028 + $0xc] sm:$0xf]
      %v2033 = vlaneseq
      %v2034 = vshrl.u32 %v2033, 7
      %v2035 = vsub.s32 0, %v2034
      %v2036 = vrot.slane %v338, %v2035
      %v2041 = vunpack.c.l.b16 %v2029
      %v2042 = vunpack.c.l.b16 %v2030
      %v2043 = vunpack.c.l.b16 %v2031
      %v2044 = vunpack.c.l.b16 %v2032
      %v2045 = vpack.c.b16 %v2042, %v2041
      %v2046 = vpack.c.b16 %v2044, %v2043
      %v2050 = vsel %vm778, %v2027, 0
      %2052 = vmatprep.subr.bf16.mxu0 0
      %2053 = vmatpush1.bf16.msra.mxu0 %v2045
      %2054 = vmatprep.subr.bf16.mxu0 0
      %2055 = vmatpush1.bf16.msra.mxu0 %v2046
      %2056 = vmatprep.subr.bf16.mxu0 0
      %2057 = vmatpush1.bf16.msra.mxu0 0
      %2058 = vmatprep.subr.bf16.mxu0 0
      %2059 = vmatpush1.bf16.msra.mxu0 0
      %2060 = vmatprep.subr.bf16.mxu0 0
      %2061 = vmatpush1.bf16.msra.mxu0 0
      %2062 = vmatprep.subr.bf16.mxu0 0
      %2063 = vmatpush1.bf16.msra.mxu0 0
      %2064 = vmatprep.subr.bf16.mxu0 0
      %2065 = vmatpush1.bf16.msra.mxu0 0
      %2066 = vmatprep.subr.bf16.mxu0 0
      %2067 = vmatpush1.bf16.msra.mxu0 0
      %2068 = vmatprep.subr.bf16.mxu0 0
      %2069 = vmatpush1.bf16.msra.mxu0 0
      %2070 = vmatprep.subr.bf16.mxu0 0
      %2071 = vmatpush1.bf16.msra.mxu0 0
      %2072 = vmatprep.subr.bf16.mxu0 0
      %2073 = vmatpush1.bf16.msra.mxu0 0
      %2074 = vmatprep.subr.bf16.mxu0 0
      %2075 = vmatpush1.bf16.msra.mxu0 0
      %2076 = vmatprep.subr.bf16.mxu0 0
      %2077 = vmatpush1.bf16.msra.mxu0 0
      %2078 = vmatprep.subr.bf16.mxu0 0
      %2079 = vmatpush1.bf16.msra.mxu0 0
      %2080 = vmatprep.subr.bf16.mxu0 0
      %2081 = vmatpush1.bf16.msra.mxu0 0
      %2082 = vmatprep.subr.bf16.mxu0 0
      %2083 = vmatpush1.bf16.msra.mxu0 0
      %2084 = vmatprep.mubr.bf16.mxu0 0
      %2085 = vmatmul.mubr.bf16.gmra.mrb[0].mxu0 %v2050
      %v2086 = vpop.f32.mrb[0].mxu0
      %v2087 = vadd.f32 %v2036, %v2086
      %v2088 = vpop.f32.mrb[0].mxu0
      %v2089 = vpop.f32.mrb[0].mxu0
      %v2090 = vadd.f32 %v2036, %v2089
      %v2091 = vpop.f32.mrb[0].mxu0
      %2092 = vdwg.mxu0
      %v2093 = vsel %vm778, %v2087, 0.0
      %2094 = vadd.xlane.f32.xlu0 %v2093
      %v2095 = vpop.xlane.xlu0 %2094
      %v2096 = vsel %vm778, %v2090, 0.0
      %2097 = vadd.xlane.f32.xlu0 %v2096
      %v2098 = vpop.xlane.xlu0 %2097
      %v2099 = vmul.f32 %v2095, %v948
      %v2100 = vmul.f32 %v2098, %v948
      %v2101 = vmul.f32 %v2087, %v2087
      %v2102 = vmul.f32 %v2090, %v2090
      %v2103 = vsel %vm778, %v2101, 0.0
      %2104 = vadd.xlane.f32.xlu0 %v2103
      %v2105 = vpop.xlane.xlu0 %2104
      %v2106 = vsel %vm778, %v2102, 0.0
      %2107 = vadd.xlane.f32.xlu0 %v2106
      %v2108 = vpop.xlane.xlu0 %2107
      %v2109 = vmul.f32 %v2105, %v948
      %v2110 = vmul.f32 %v2108, %v948
      %v2111 = vmul.f32 %v2099, %v2099
      %v2112 = vmul.f32 %v2100, %v2100
      %v2113 = vsub.f32 %v2109, %v2111
      %v2114 = vsub.f32 %v2110, %v2112
      %v2115 = vmax.f32 %v2113, 0.0
      %v2116 = vmax.f32 %v2114, 0.0
      %v2117 = vsub.f32 %v2087, %v2099
      %v2118 = vsub.f32 %v2090, %v2100
      %v2119 = vadd.f32 %v2115, 1e-05
      %v2120 = vadd.f32 %v2116, 1e-05
      %v2121 = vrsqrt.pop %v2119
      %v2122 = vrsqrt.pop %v2120
      %v2123 = vmul.f32 %v2117, %v2121
      %v2124 = vmul.f32 %v2118, %v2122
      %v2125 = vlaneseq
      %v2126 = vshrl.u32 %v2125, 7
      %v2127 = vsub.s32 1, %v2126
      %v2128 = vrot.slane %v338, %v2127
      %v2129 = vmul.f32 %v2123, %v2128
      %v2130 = vmul.f32 %v2124, %v2128
      %v2131 = vlaneseq
      %v2132 = vshrl.u32 %v2131, 7
      %v2133 = vsub.s32 2, %v2132
      %v2134 = vrot.slane %v338, %v2133
      %v2135 = vadd.f32 %v2129, %v2134
      %v2136 = vadd.f32 %v2130, %v2134
      %v2137 = vmax.f32 %v2135, 0.0
      %v2138 = vmax.f32 %v2136, 0.0
      %2140 = vset.pattern.permute.xlu0 0
      %2141 = vperm.xlu0 %2140, %v338
      %v2142 = vpop.permute.xlu0 %2141
      %v2143 = vrot.slane %v338, 3
      %v2144 = vrot.slane %v2142, 4
      %v2146 = vsel %vm778, %v2143, 0
      %v2149 = vsel %vm778, %v2137, 0
      %v2152 = vsel %vm778, %v2138, 0
      %2154 = vmatprep.subr.mxu0 0.0
      %2155 = vmatpush1.xpose.msra.mxu0 %v2149
      %2156 = vmatprep.subr.mxu0 0.0
      %2157 = vmatpush1.xpose.msra.mxu0 %v2152
      %2158 = vmatprep.subr.mxu0 0.0
      %2159 = vmatpush1.xpose.msra.mxu0 0.0
      %2160 = vmatprep.subr.mxu0 0.0
      %2161 = vmatpush1.xpose.msra.mxu0 0.0
      %2162 = vmatprep.subr.mxu0 0.0
      %2163 = vmatpush1.xpose.msra.mxu0 0.0
      %2164 = vmatprep.subr.mxu0 0.0
      %2165 = vmatpush1.xpose.msra.mxu0 0.0
      %2166 = vmatprep.subr.mxu0 0.0
      %2167 = vmatpush1.xpose.msra.mxu0 0.0
      %2168 = vmatprep.subr.mxu0 0.0
      %2169 = vmatpush1.xpose.msra.mxu0 0.0
      %2170 = vmatprep.subr.mxu0 0.0
      %2171 = vmatpush1.xpose.msra.mxu0 0.0
      %2172 = vmatprep.subr.mxu0 0.0
      %2173 = vmatpush1.xpose.msra.mxu0 0.0
      %2174 = vmatprep.subr.mxu0 0.0
      %2175 = vmatpush1.xpose.msra.mxu0 0.0
      %2176 = vmatprep.subr.mxu0 0.0
      %2177 = vmatpush1.xpose.msra.mxu0 0.0
      %2178 = vmatprep.subr.mxu0 0.0
      %2179 = vmatpush1.xpose.msra.mxu0 0.0
      %2180 = vmatprep.subr.mxu0 0.0
      %2181 = vmatpush1.xpose.msra.mxu0 0.0
      %2182 = vmatprep.subr.mxu0 0.0
      %2183 = vmatpush1.xpose.msra.mxu0 0.0
      %2184 = vmatprep.subr.mxu0 0.0
      %2185 = vmatpush1.xpose.msra.mxu0 0.0
      %2186 = vmatprep.subr.mxu0 0.0
      %2187 = vmatpush1.xpose.msra.mxu0 0.0
      %2188 = vmatprep.subr.mxu0 0.0
      %2189 = vmatpush1.xpose.msra.mxu0 0.0
      %2190 = vmatprep.subr.mxu0 0.0
      %2191 = vmatpush1.xpose.msra.mxu0 0.0
      %2192 = vmatprep.subr.mxu0 0.0
      %2193 = vmatpush1.xpose.msra.mxu0 0.0
      %2194 = vmatprep.subr.mxu0 0.0
      %2195 = vmatpush1.xpose.msra.mxu0 0.0
      %2196 = vmatprep.subr.mxu0 0.0
      %2197 = vmatpush1.xpose.msra.mxu0 0.0
      %2198 = vmatprep.subr.mxu0 0.0
      %2199 = vmatpush1.xpose.msra.mxu0 0.0
      %2200 = vmatprep.subr.mxu0 0.0
      %2201 = vmatpush1.xpose.msra.mxu0 0.0
      %2202 = vmatprep.subr.mxu0 0.0
      %2203 = vmatpush1.xpose.msra.mxu0 0.0
      %2204 = vmatprep.subr.mxu0 0.0
      %2205 = vmatpush1.xpose.msra.mxu0 0.0
      %2206 = vmatprep.subr.mxu0 0.0
      %2207 = vmatpush1.xpose.msra.mxu0 0.0
      %2208 = vmatprep.subr.mxu0 0.0
      %2209 = vmatpush1.xpose.msra.mxu0 0.0
      %2210 = vmatprep.subr.mxu0 0.0
      %2211 = vmatpush1.xpose.msra.mxu0 0.0
      %2212 = vmatprep.subr.mxu0 0.0
      %2213 = vmatpush1.xpose.msra.mxu0 0.0
      %2214 = vmatprep.subr.mxu0 0.0
      %2215 = vmatpush1.xpose.msra.mxu0 0.0
      %2216 = vmatprep.subr.mxu0 0.0
      %2217 = vmatpush1.xpose.msra.mxu0 0.0
      %2218 = vmatprep.mubr.f32.mxu0 0.0
      %2219 = vmatmul.mubr.f32.gmra.mrb[0].mxu0 %v2146
      %v2220 = vpop.f32.mrb[0].mxu0
      %v2221 = vadd.f32 %v2144, %v2220
      %v2222 = vpop.f32.mrb[0].mxu0
      %2223 = vdwg.mxu0
      %vm2224 = vcmask 130048
      %v2226 = vsel %vm2224, %v2221, 0
      %2228 = vmatprep.subr.mxu0 0.0
      %2229 = vmatpush1.msra.mxu0 %v335
      %2230 = vmatprep.subr.mxu0 0.0
      %2231 = vmatpush1.msra.mxu0 %v336
      %2232 = vmatprep.subr.mxu0 0.0
      %2233 = vmatpush1.msra.mxu0 0.0
      %2234 = vmatprep.subr.mxu0 0.0
      %2235 = vmatpush1.msra.mxu0 0.0
      %2236 = vmatprep.subr.mxu0 0.0
      %2237 = vmatpush1.msra.mxu0 0.0
      %2238 = vmatprep.subr.mxu0 0.0
      %2239 = vmatpush1.msra.mxu0 0.0
      %2240 = vmatprep.subr.mxu0 0.0
      %2241 = vmatpush1.msra.mxu0 0.0
      %2242 = vmatprep.subr.mxu0 0.0
      %2243 = vmatpush1.msra.mxu0 0.0
      %2244 = vmatprep.subr.mxu0 0.0
      %2245 = vmatpush1.msra.mxu0 0.0
      %2246 = vmatprep.subr.mxu0 0.0
      %2247 = vmatpush1.msra.mxu0 0.0
      %2248 = vmatprep.subr.mxu0 0.0
      %2249 = vmatpush1.msra.mxu0 0.0
      %2250 = vmatprep.subr.mxu0 0.0
      %2251 = vmatpush1.msra.mxu0 0.0
      %2252 = vmatprep.subr.mxu0 0.0
      %2253 = vmatpush1.msra.mxu0 0.0
      %2254 = vmatprep.subr.mxu0 0.0
      %2255 = vmatpush1.msra.mxu0 0.0
      %2256 = vmatprep.subr.mxu0 0.0
      %2257 = vmatpush1.msra.mxu0 0.0
      %2258 = vmatprep.subr.mxu0 0.0
      %2259 = vmatpush1.msra.mxu0 0.0
      %2260 = vmatprep.subr.mxu0 0.0
      %2261 = vmatpush1.msra.mxu0 0.0
      %2262 = vmatprep.subr.mxu0 0.0
      %2263 = vmatpush1.msra.mxu0 0.0
      %2264 = vmatprep.subr.mxu0 0.0
      %2265 = vmatpush1.msra.mxu0 0.0
      %2266 = vmatprep.subr.mxu0 0.0
      %2267 = vmatpush1.msra.mxu0 0.0
      %2268 = vmatprep.subr.mxu0 0.0
      %2269 = vmatpush1.msra.mxu0 0.0
      %2270 = vmatprep.subr.mxu0 0.0
      %2271 = vmatpush1.msra.mxu0 0.0
      %2272 = vmatprep.subr.mxu0 0.0
      %2273 = vmatpush1.msra.mxu0 0.0
      %2274 = vmatprep.subr.mxu0 0.0
      %2275 = vmatpush1.msra.mxu0 0.0
      %2276 = vmatprep.subr.mxu0 0.0
      %2277 = vmatpush1.msra.mxu0 0.0
      %2278 = vmatprep.subr.mxu0 0.0
      %2279 = vmatpush1.msra.mxu0 0.0
      %2280 = vmatprep.subr.mxu0 0.0
      %2281 = vmatpush1.msra.mxu0 0.0
      %2282 = vmatprep.subr.mxu0 0.0
      %2283 = vmatpush1.msra.mxu0 0.0
      %2284 = vmatprep.subr.mxu0 0.0
      %2285 = vmatpush1.msra.mxu0 0.0
      %2286 = vmatprep.subr.mxu0 0.0
      %2287 = vmatpush1.msra.mxu0 0.0
      %2288 = vmatprep.subr.mxu0 0.0
      %2289 = vmatpush1.msra.mxu0 0.0
      %2290 = vmatprep.subr.mxu0 0.0
      %2291 = vmatpush1.msra.mxu0 0.0
      %2292 = vmatprep.mubr.f32.mxu0 0.0
      %2293 = vmatmul.mubr.f32.gmra.mrb[0].mxu0 %v2226
      %v2294 = vpop.f32.mrb[0].mxu0
      %v2295 = vadd.f32 0.0, %v2294
      %v2296 = vpop.f32.mrb[0].mxu0
      %2297 = vdwg.mxu0
      %v2299 = vsel %vm778, %v1975, 0
      %v2302 = vsel %vm778, %v1976, 0
      %v2305 = vsel %vm778, %v1977, 0
      %v2308 = vsel %vm778, %v1978, 0
      %v2311 = vsel %vm778, %v1979, 0
      %v2314 = vsel %vm778, %v1980, 0
      %v2317 = vsel %vm778, %v1981, 0
      %v2320 = vsel %vm778, %v1982, 0
      %2322 = vmatprep.subr.bf16.mxu0 0
      %2323 = vmatpush1.bf16.xpose.msra.mxu0 %v2299
      %2324 = vmatprep.subr.bf16.mxu0 0
      %2325 = vmatpush1.bf16.xpose.msra.mxu0 %v2302
      %2326 = vmatprep.subr.bf16.mxu0 0
      %2327 = vmatpush1.bf16.xpose.msra.mxu0 %v2305
      %2328 = vmatprep.subr.bf16.mxu0 0
      %2329 = vmatpush1.bf16.xpose.msra.mxu0 %v2308
      %2330 = vmatprep.subr.bf16.mxu0 0
      %2331 = vmatpush1.bf16.xpose.msra.mxu0 %v2311
      %2332 = vmatprep.subr.bf16.mxu0 0
      %2333 = vmatpush1.bf16.xpose.msra.mxu0 %v2314
      %2334 = vmatprep.subr.bf16.mxu0 0
      %2335 = vmatpush1.bf16.xpose.msra.mxu0 %v2317
      %2336 = vmatprep.subr.bf16.mxu0 0
      %2337 = vmatpush1.bf16.xpose.msra.mxu0 %v2320
      %2338 = vmatprep.subr.bf16.mxu0 0
      %2339 = vmatpush1.bf16.xpose.msra.mxu0 0
      %2340 = vmatprep.subr.bf16.mxu0 0
      %2341 = vmatpush1.bf16.xpose.msra.mxu0 0
      %2342 = vmatprep.subr.bf16.mxu0 0
      %2343 = vmatpush1.bf16.xpose.msra.mxu0 0
      %2344 = vmatprep.subr.bf16.mxu0 0
      %2345 = vmatpush1.bf16.xpose.msra.mxu0 0
      %2346 = vmatprep.subr.bf16.mxu0 0
      %2347 = vmatpush1.bf16.xpose.msra.mxu0 0
      %2348 = vmatprep.subr.bf16.mxu0 0
      %2349 = vmatpush1.bf16.xpose.msra.mxu0 0
      %2350 = vmatprep.subr.bf16.mxu0 0
      %2351 = vmatpush1.bf16.xpose.msra.mxu0 0
      %2352 = vmatprep.subr.bf16.mxu0 0
      %2353 = vmatpush1.bf16.xpose.msra.mxu0 0
      %2354 = vmatprep.mubr.bf16.mxu0 0
      %2355 = vmatmul.mubr.bf16.gmra.mrb[0].mxu0 %v2299
      %v2356 = vpop.f32.mrb[0].mxu0
      %v2357 = vadd.f32 0.0, %v2356
      %v2358 = vpop.f32.mrb[0].mxu0
      %v2359 = vpop.f32.mrb[0].mxu0
      %v2360 = vadd.f32 0.0, %v2359
      %v2361 = vpop.f32.mrb[0].mxu0
      %2362 = vmatprep.mubr.bf16.mxu0 0
      %2363 = vmatmul.mubr.bf16.gmra.mrb[0].mxu0 %v2302
      %v2364 = vpop.f32.mrb[0].mxu0
      %v2365 = vadd.f32 0.0, %v2364
      %v2366 = vpop.f32.mrb[0].mxu0
      %v2367 = vpop.f32.mrb[0].mxu0
      %v2368 = vadd.f32 0.0, %v2367
      %v2369 = vpop.f32.mrb[0].mxu0
      %2370 = vmatprep.mubr.bf16.mxu0 0
      %2371 = vmatmul.mubr.bf16.gmra.mrb[0].mxu0 %v2305
      %v2372 = vpop.f32.mrb[0].mxu0
      %v2373 = vadd.f32 0.0, %v2372
      %v2374 = vpop.f32.mrb[0].mxu0
      %v2375 = vpop.f32.mrb[0].mxu0
      %v2376 = vadd.f32 0.0, %v2375
      %v2377 = vpop.f32.mrb[0].mxu0
      %2378 = vmatprep.mubr.bf16.mxu0 0
      %2379 = vmatmul.mubr.bf16.gmra.mrb[0].mxu0 %v2308
      %v2380 = vpop.f32.mrb[0].mxu0
      %v2381 = vadd.f32 0.0, %v2380
      %v2382 = vpop.f32.mrb[0].mxu0
      %v2383 = vpop.f32.mrb[0].mxu0
      %v2384 = vadd.f32 0.0, %v2383
      %v2385 = vpop.f32.mrb[0].mxu0
      %2386 = vmatprep.mubr.bf16.mxu0 0
      %2387 = vmatmul.mubr.bf16.gmra.mrb[0].mxu0 %v2311
      %v2388 = vpop.f32.mrb[0].mxu0
      %v2389 = vadd.f32 0.0, %v2388
      %v2390 = vpop.f32.mrb[0].mxu0
      %v2391 = vpop.f32.mrb[0].mxu0
      %v2392 = vadd.f32 0.0, %v2391
      %v2393 = vpop.f32.mrb[0].mxu0
      %2394 = vmatprep.mubr.bf16.mxu0 0
      %2395 = vmatmul.mubr.bf16.gmra.mrb[0].mxu0 %v2314
      %v2396 = vpop.f32.mrb[0].mxu0
      %v2397 = vadd.f32 0.0, %v2396
      %v2398 = vpop.f32.mrb[0].mxu0
      %v2399 = vpop.f32.mrb[0].mxu0
      %v2400 = vadd.f32 0.0, %v2399
      %v2401 = vpop.f32.mrb[0].mxu0
      %2402 = vmatprep.mubr.bf16.mxu0 0
      %2403 = vmatmul.mubr.bf16.gmra.mrb[0].mxu0 %v2317
      %v2404 = vpop.f32.mrb[0].mxu0
      %v2405 = vadd.f32 0.0, %v2404
      %v2406 = vpop.f32.mrb[0].mxu0
      %v2407 = vpop.f32.mrb[0].mxu0
      %v2408 = vadd.f32 0.0, %v2407
      %v2409 = vpop.f32.mrb[0].mxu0
      %2410 = vmatprep.mubr.bf16.mxu0 0
      %2411 = vmatmul.mubr.bf16.gmra.mrb[0].mxu0 %v2320
      %v2412 = vpop.f32.mrb[0].mxu0
      %v2413 = vadd.f32 0.0, %v2412
      %v2414 = vpop.f32.mrb[0].mxu0
      %v2415 = vpop.f32.mrb[0].mxu0
      %v2416 = vadd.f32 0.0, %v2415
      %v2417 = vpop.f32.mrb[0].mxu0
      %2418 = vdwg.mxu0
      %v2419 = vmul.f32 %v2357, %v318
      %v2420 = vmul.f32 %v2360, %v319
      %v2421 = vmul.f32 %v2365, %v320
      %v2422 = vmul.f32 %v2368, %v321
      %v2423 = vmul.f32 %v2373, %v322
      %v2424 = vmul.f32 %v2376, %v323
      %v2425 = vmul.f32 %v2381, %v324
      %v2426 = vmul.f32 %v2384, %v325
      %v2427 = vmul.f32 %v2389, %v326
      %v2428 = vmul.f32 %v2392, %v327
      %v2429 = vmul.f32 %v2397, %v328
      %v2430 = vmul.f32 %v2400, %v329
      %v2431 = vmul.f32 %v2405, %v330
      %v2432 = vmul.f32 %v2408, %v331
      %v2433 = vmul.f32 %v2413, %v332
      %v2434 = vmul.f32 %v2416, %v333
      %2435 = vmatprep.subr.mxu0 0.0
      %2436 = vmatpush1.msra.mxu0 %v2419
      %2437 = vmatprep.subr.mxu0 0.0
      %2438 = vmatpush1.msra.mxu0 %v2420
      %2439 = vmatprep.subr.mxu0 0.0
      %2440 = vmatpush1.msra.mxu0 %v2421
      %2441 = vmatprep.subr.mxu0 0.0
      %2442 = vmatpush1.msra.mxu0 %v2422
      %2443 = vmatprep.subr.mxu0 0.0
      %2444 = vmatpush1.msra.mxu0 %v2423
      %2445 = vmatprep.subr.mxu0 0.0
      %2446 = vmatpush1.msra.mxu0 %v2424
      %2447 = vmatprep.subr.mxu0 0.0
      %2448 = vmatpush1.msra.mxu0 %v2425
      %2449 = vmatprep.subr.mxu0 0.0
      %2450 = vmatpush1.msra.mxu0 %v2426
      %2451 = vmatprep.subr.mxu0 0.0
      %2452 = vmatpush1.msra.mxu0 %v2427
      %2453 = vmatprep.subr.mxu0 0.0
      %2454 = vmatpush1.msra.mxu0 %v2428
      %2455 = vmatprep.subr.mxu0 0.0
      %2456 = vmatpush1.msra.mxu0 %v2429
      %2457 = vmatprep.subr.mxu0 0.0
      %2458 = vmatpush1.msra.mxu0 %v2430
      %2459 = vmatprep.subr.mxu0 0.0
      %2460 = vmatpush1.msra.mxu0 %v2431
      %2461 = vmatprep.subr.mxu0 0.0
      %2462 = vmatpush1.msra.mxu0 %v2432
      %2463 = vmatprep.subr.mxu0 0.0
      %2464 = vmatpush1.msra.mxu0 %v2433
      %2465 = vmatprep.subr.mxu0 0.0
      %2466 = vmatpush1.msra.mxu0 %v2434
      %2467 = vmatprep.subr.mxu0 0.0
      %2468 = vmatpush1.msra.mxu0 0.0
      %2469 = vmatprep.subr.mxu0 0.0
      %2470 = vmatpush1.msra.mxu0 0.0
      %2471 = vmatprep.subr.mxu0 0.0
      %2472 = vmatpush1.msra.mxu0 0.0
      %2473 = vmatprep.subr.mxu0 0.0
      %2474 = vmatpush1.msra.mxu0 0.0
      %2475 = vmatprep.subr.mxu0 0.0
      %2476 = vmatpush1.msra.mxu0 0.0
      %2477 = vmatprep.subr.mxu0 0.0
      %2478 = vmatpush1.msra.mxu0 0.0
      %2479 = vmatprep.subr.mxu0 0.0
      %2480 = vmatpush1.msra.mxu0 0.0
      %2481 = vmatprep.subr.mxu0 0.0
      %2482 = vmatpush1.msra.mxu0 0.0
      %2483 = vmatprep.subr.mxu0 0.0
      %2484 = vmatpush1.msra.mxu0 0.0
      %2485 = vmatprep.subr.mxu0 0.0
      %2486 = vmatpush1.msra.mxu0 0.0
      %2487 = vmatprep.subr.mxu0 0.0
      %2488 = vmatpush1.msra.mxu0 0.0
      %2489 = vmatprep.subr.mxu0 0.0
      %2490 = vmatpush1.msra.mxu0 0.0
      %2491 = vmatprep.subr.mxu0 0.0
      %2492 = vmatpush1.msra.mxu0 0.0
      %2493 = vmatprep.subr.mxu0 0.0
      %2494 = vmatpush1.msra.mxu0 0.0
      %2495 = vmatprep.subr.mxu0 0.0
      %2496 = vmatpush1.msra.mxu0 0.0
      %2497 = vmatprep.subr.mxu0 0.0
      %2498 = vmatpush1.msra.mxu0 0.0
      %2499 = vmatprep.mubr.f32.mxu0 0.0
      %2500 = vmatmul.mubr.f32.gmra.mrb[0].mxu0 %v334
      %v2501 = vpop.f32.mrb[0].mxu0
      %v2502 = vadd.f32 0.0, %v2501
      %v2503 = vpop.f32.mrb[0].mxu0
      %2504 = vdwg.mxu0
      %v2505 = vmul.f32 %v2502, 0.17677669
      %2506 = vst [vmem:[%s300] sm:$0xff] %v2505
      %vm2507 = vcmp.gt.f32.partialorder %v334, 0.0
      %v2509 = vrot.slane %v2505, 7
      %v2511 = vsel %vm2507, %v2295, %v2509
      %2512 = vst [vmem:[%s300 + $0x7] sm:$0x1] %v2511
      %p2513 = scmp.lt.s32.totalorder %s18, 1
      %s2514 = scalar_select %p2513, %s18, 1
      %s2515 = smul.addr %s2514, 8
      %s2516 = scalar_lea.vmem %s7, %s2515
      // Predicated region
      $region49: #{ring_policy_forward.1} parent=47 // pred_check
        %p2517 = pneg %p193
      $region50: #{ring_policy_forward.1} parent=47 // pred_check_branch
        %2519 = sbr.rel (%p2517) target = $region52
      $region51: #{ring_policy_forward.1} parent=47 // pred_region
        _
      $region52: #{ring_policy_forward.1} parent=47 // pred_fallthru
        _
    $region48: #{ring_policy_forward.1} parent=5 // pred_fallthru
      _
    %p2520 = scmp.le.s32.totalorder 2, %s13
    // Predicated region
    $region53: #{ring_policy_forward.1} parent=5 // pred_check
      %p2521 = pneg %p2520
    $region54: #{ring_policy_forward.1} parent=5 // pred_check_branch
      %2523 = sbr.rel (%p2521) target = $region56
    $region55: #{ring_policy_forward.1} parent=5 // pred_region
      %s2524 = ssub.s32 %s13, 2
      // Predicated region
      $region57: #{ring_policy_forward.1} parent=55 // pred_check
        %p2525 = pneg %p199
      $region58: #{ring_policy_forward.1} parent=55 // pred_check_branch
        %2527 = sbr.rel (%p2525) target = $region60
      $region59: #{ring_policy_forward.1} parent=55 // pred_region
        %p2528 = scmp.lt.s32.totalorder %s19, 1
        %s2529 = scalar_select %p2528, %s19, 1
        %s2530 = smul.addr %s2529, 8
        %s2531 = scalar_lea.vmem %s7, %s2530
      $region60: #{ring_policy_forward.1} parent=55 // pred_fallthru
        _
    $region56: #{ring_policy_forward.1} parent=5 // pred_fallthru
      _
  $region6: #{ring_policy_forward.1} parent=0 // loop_footer
    %s17 = sadd.s32 1, %s13
  $region7: #{ring_policy_forward.1} parent=0 // loop_footer_branch
    %12 = sbr.rel target = $region3
  $region8: #{ring_policy_forward.1} parent=0 // loop_exit
    _

</llo_original>
